<compile_context>
chip_gen: v7x
topology: tpu7x:2x2x1
jax: 0.10.0
libtpu: 0.0.40
codegen_flags: <defaults>
</compile_context>

<pallas_src>
import functools

import jax
import jax.numpy as jnp
from jax import lax
from jax.experimental import pallas as pl
from jax.experimental.pallas import tpu as pltpu


def mhsa_kernel(x_cn_ref, w_qkv_ref, b_qkv_ref, rel_ref, o_ref, *, heads):
    f32 = jnp.float32
    bf16 = jnp.bfloat16

    x_cn = x_cn_ref[0]                       # [C, N] bf16 (rows = channels)
    C = x_cn.shape[0]
    d = C // heads

    # Fused all-head Q/K/V projection: one [3C,C] x [C,N] MXU matmul.
    #   qkv[o, n] = sum_c W_qkv[o, c] * x[c, n] + b_qkv[o]
    qkv = jnp.dot(w_qkv_ref[...], x_cn, preferred_element_type=f32) + b_qkv_ref[...]

    q_cn = qkv[0:C, :].astype(bf16)          # [C, N]
    k_cn = qkv[C:2 * C, :].astype(bf16)      # [C, N]
    v_cn = qkv[2 * C:3 * C, :].astype(bf16)  # [C, N]

    # q is needed in both layouts by the fused energy matmul: [N,C] rows on
    # the lhs, [C,N] rows on the rhs.  One f32 XLU transpose per batch.
    q_nc = jnp.transpose(qkv[0:C, :], (1, 0)).astype(bf16)   # [N, C]

    rel = rel_ref[...]                       # [N, C] bf16, rel[n, h*d+dd]

    nt = (((1,), (1,)), ((), ()))            # contract both minor dims (NT)

    # Static per-head loop (heads is small; all slices are compile-time).
    # TODO(synk): for many heads / large N, switch to pl.loop + pl.ds with
    # pl.multiple_of starts so vreg live ranges stay bounded.
    for h in range(heads):
        lo, hi = h * d, (h + 1) * d

        # Fused content-content + content-position energy:
        #   energy[n, m] = sum_dd q[n,dd]*k[dd,m] + rel[n,dd]*q[dd,m]
        # as a single [N, 2d] x [2d, N] matmul (no [N,N] VPU add).
        lhs = jnp.concatenate([q_nc[:, lo:hi], rel[:, lo:hi]], axis=1)    # [N, 2d]
        rhs = jnp.concatenate([k_cn[lo:hi, :], q_cn[lo:hi, :]], axis=0)   # [2d, N]
        energy = jnp.dot(lhs, rhs, preferred_element_type=f32)            # [N, N]

        # Softmax over m, in f32.
        m = jnp.max(energy, axis=-1, keepdims=True)
        p = jnp.exp(energy - m)
        l = jnp.sum(p, axis=-1, keepdims=True)
        att = (p * pl.reciprocal(l, approx=True)).astype(bf16)            # [N, N]

        # out[dd, n] = sum_m v[dd, m] * att[n, m]  -> lane-dense [d, N]
        out_h = lax.dot_general(v_cn[lo:hi, :], att, nt,
                                preferred_element_type=f32)
        o_ref[0, lo:hi, :] = out_h.astype(o_ref.dtype)


def _vmem_limit_bytes(C, N, heads):
    """Resident-set estimate for one grid step, with headroom."""
    d = C // heads
    bf, f4 = 2, 4
    resident = (
        2 * C * N * bf            # x_cn block (double-buffered)
        + 2 * C * N * f4          # output block (double-buffered)
        + 2 * 3 * C * C * bf      # fused W_qkv (default double-buffered)
        + 2 * 3 * C * f4          # fused bias
        + 2 * N * C * bf          # rel
        + 3 * C * N * (f4 + bf)   # qkv f32 accumulator + bf16 copies
        + N * C * (f4 + bf)       # q_nc transpose
        + N * N * (2 * f4 + bf)   # energy + p (f32), att (bf16) per head
        + 4 * d * N * bf          # per-head lhs/rhs concats
        + d * N * f4              # per-head output accumulator
    )
    # 2x headroom for compiler temporaries / spills; clamp to a range that is
    # valid on every generation (v7x has 64 MiB physical VMEM per TensorCore).
    return int(min(max(2 * resident, 32 * 1024 * 1024), 64 * 1024 * 1024))


def mhsa_forward(x, params, heads):
    """x: NCHW [B, C, W, H] float32; returns NCHW [B, C, W, H]."""
    B, C, W, H = x.shape
    N = W * H
    d = C // heads

    # NCHW is already [B, C, W*H] contiguous -> free reshape; single x layout.
    x_cn = x.reshape(B, C, N).astype(jnp.bfloat16)

    # Stack the three 1x1-conv projections so the kernel does a single fused
    # QKV matmul per batch element.
    w_qkv = jnp.concatenate(
        [jnp.asarray(params["wq"]), jnp.asarray(params["wk"]),
         jnp.asarray(params["wv"])], axis=0).astype(jnp.bfloat16)        # [3C, C]
    b_qkv = jnp.concatenate(
        [params["bq"], params["bk"], params["bv"]], axis=0
    ).reshape(3 * C, 1).astype(jnp.float32)                              # [3C, 1]

    # (rel_h + rel_w).view(1, heads, d, N).permute(0,1,3,2) -> per-position
    # channel-major layout [N, C] with rel[n, h*d+dd].
    rel = (params["rel_h"] + params["rel_w"]).reshape(heads, d, N)
    rel = jnp.transpose(rel, (2, 0, 1)).reshape(N, C).astype(jnp.bfloat16)

    # TODO(synk): for N >= ~1024 the [N,N] intermediates need flash-style key
    # tiling (grid=(B, Nq_tiles, Nk_tiles) with online softmax) to fit v7x's
    # 64 MiB VMEM; single-tile form is kept for BoT-scale N.
    out = pl.pallas_call(
        functools.partial(mhsa_kernel, heads=heads),
        out_shape=jax.ShapeDtypeStruct((B, C, N), x.dtype),
        grid=(B,),
        in_specs=[
            pl.BlockSpec((1, C, N), lambda b: (b, 0, 0)),   # x_cn
            pl.BlockSpec((3 * C, C), lambda b: (0, 0)),     # W_qkv (resident)
            pl.BlockSpec((3 * C, 1), lambda b: (0, 0)),     # b_qkv (resident)
            pl.BlockSpec((N, C), lambda b: (0, 0)),         # rel   (resident)
        ],
        out_specs=pl.BlockSpec((1, C, N), lambda b: (b, 0, 0)),
        compiler_params=pltpu.CompilerParams(
            dimension_semantics=("parallel",),
            vmem_limit_bytes=_vmem_limit_bytes(C, N, heads)),
    )(x_cn, w_qkv, b_qkv, rel)

    # [B, C, N] -> NCHW [B, C, W, H] (contiguous reshape, no transpose).
    return out.reshape(B, C, W, H)


def mhsa_reference(x, params, heads):
    """Pure-JAX (f32) mirror of the PyTorch forward, for verification."""
    B, C, W, H = x.shape
    N = W * H
    d = C // heads

    def conv1x1(x, w, b):
        return jnp.einsum("bcwh,oc->bowh", x, w) + b[None, :, None, None]

    q = conv1x1(x, params["wq"], params["bq"]).reshape(B, heads, d, N)
    k = conv1x1(x, params["wk"], params["bk"]).reshape(B, heads, d, N)
    v = conv1x1(x, params["wv"], params["bv"]).reshape(B, heads, d, N)

    cc = jnp.einsum("bhdn,bhdm->bhnm", q, k)
    relp = (params["rel_h"] + params["rel_w"]).reshape(heads, d, N)
    relp = jnp.transpose(relp, (0, 2, 1))                 # [heads, N, d]
    cp = jnp.einsum("hnd,bhdm->bhnm", relp, q)
    energy = cc + cp
    att = jax.nn.softmax(energy, axis=-1)
    out = jnp.einsum("bhdm,bhnm->bhdn", v, att)
    return out.reshape(B, C, W, H)


if __name__ == "__main__":
    B, C, W, H, heads = 2, 16, 8, 8, 4
    d = C // heads

    key = jax.random.PRNGKey(0)
    ks = jax.random.split(key, 9)
    params = {
        "wq": jax.random.normal(ks[0], (C, C), jnp.float32) * 0.1,
        "wk": jax.random.normal(ks[1], (C, C), jnp.float32) * 0.1,
        "wv": jax.random.normal(ks[2], (C, C), jnp.float32) * 0.1,
        "bq": jax.random.normal(ks[3], (C,), jnp.float32) * 0.1,
        "bk": jax.random.normal(ks[4], (C,), jnp.float32) * 0.1,
        "bv": jax.random.normal(ks[5], (C,), jnp.float32) * 0.1,
        "rel_h": jax.random.normal(ks[6], (1, heads, d, 1, H), jnp.float32),
        "rel_w": jax.random.normal(ks[7], (1, heads, d, W, 1), jnp.float32),
    }
    x = jax.random.normal(ks[8], (B, C, W, H), jnp.float32)

    out = jax.block_until_ready(mhsa_forward(x, params, heads))
    ref = jax.block_until_ready(mhsa_reference(x, params, heads))

    assert out.shape == (B, C, W, H)
    # bf16 MXU operands => looser tolerance than pure-f32 (softmax stays f32).
    max_diff = jnp.max(jnp.abs(out - ref))
    assert jnp.allclose(out, ref, atol=5e-2, rtol=5e-2), (
        f"max abs diff = {max_diff}")
    print("KERNEL_OK")
</pallas_src>

<mosaic_0001>
module attributes {stable_mosaic.version = 11 : i64} {
  func.func @mhsa_kernel(%arg0: i32, %arg1: memref<1x16x64xbf16, #tpu.memory_space<vmem>>, %arg2: memref<48x16xbf16, #tpu.memory_space<vmem>>, %arg3: memref<48x1xf32, #tpu.memory_space<vmem>>, %arg4: memref<64x16xbf16, #tpu.memory_space<vmem>>, %arg5: memref<1x16x64xf32, #tpu.memory_space<vmem>>) attributes {dimension_semantics = [#tpu.dimension_semantics<parallel>], iteration_bounds = array<i64: 2>, scalar_prefetch = 0 : i64, scratch_operands = 0 : i64, tpu.core_type = #tpu.core_type<tc>, window_params = [{transform_indices = @transform_0, window_bounds = array<i64: 1, 16, 64>}, {pipeline_mode = #tpu.pipeline_mode<synchronous>, transform_indices = @transform_1, window_bounds = array<i64: 48, 16>}, {pipeline_mode = #tpu.pipeline_mode<synchronous>, transform_indices = @transform_2, window_bounds = array<i64: 48, 1>}, {pipeline_mode = #tpu.pipeline_mode<synchronous>, transform_indices = @transform_3, window_bounds = array<i64: 64, 16>}, {transform_indices = @transform_4, window_bounds = array<i64: 1, 16, 64>}]} {
    %c0 = arith.constant 0 : index
    %c0_0 = arith.constant 0 : index
    %c0_1 = arith.constant 0 : index
    %0 = vector.load %arg1[%c0, %c0_0, %c0_1] : memref<1x16x64xbf16, #tpu.memory_space<vmem>>, vector<1x16x64xbf16>
    %1 = vector.shape_cast %0 : vector<1x16x64xbf16> to vector<16x64xbf16>
    %c0_2 = arith.constant 0 : index
    %c0_3 = arith.constant 0 : index
    %2 = vector.load %arg2[%c0_2, %c0_3] : memref<48x16xbf16, #tpu.memory_space<vmem>>, vector<48x16xbf16>
    %cst = arith.constant dense<0.000000e+00> : vector<48x64xf32>
    %3 = tpu.matmul %2, %1, %cst {dimension_numbers = #tpu.dot_dimension_numbers<[1], [0], [0], [1], [0, 0, 1, 1], [], []>} : vector<48x16xbf16>, vector<16x64xbf16>, vector<48x64xf32> -> vector<48x64xf32>
    %c0_4 = arith.constant 0 : index
    %c0_5 = arith.constant 0 : index
    %4 = vector.load %arg3[%c0_4, %c0_5] : memref<48x1xf32, #tpu.memory_space<vmem>>, vector<48x1xf32>
    %5 = vector.broadcast %4 : vector<48x1xf32> to vector<48x64xf32>
    %6 = arith.addf %3, %5 : vector<48x64xf32>
    %7 = vector.extract_strided_slice %6 {offsets = [0, 0], sizes = [16, 64], strides = [1, 1]} : vector<48x64xf32> to vector<16x64xf32>
    %8 = arith.truncf %7 : vector<16x64xf32> to vector<16x64xbf16>
    %9 = vector.extract_strided_slice %6 {offsets = [16, 0], sizes = [16, 64], strides = [1, 1]} : vector<48x64xf32> to vector<16x64xf32>
    %10 = arith.truncf %9 : vector<16x64xf32> to vector<16x64xbf16>
    %11 = vector.extract_strided_slice %6 {offsets = [32, 0], sizes = [16, 64], strides = [1, 1]} : vector<48x64xf32> to vector<16x64xf32>
    %12 = arith.truncf %11 : vector<16x64xf32> to vector<16x64xbf16>
    %13 = vector.extract_strided_slice %6 {offsets = [0, 0], sizes = [16, 64], strides = [1, 1]} : vector<48x64xf32> to vector<16x64xf32>
    %14 = tpu.transpose %13, [1, 0] : vector<16x64xf32> -> vector<64x16xf32>
    %15 = arith.truncf %14 : vector<64x16xf32> to vector<64x16xbf16>
    %c0_6 = arith.constant 0 : index
    %c0_7 = arith.constant 0 : index
    %16 = vector.load %arg4[%c0_6, %c0_7] : memref<64x16xbf16, #tpu.memory_space<vmem>>, vector<64x16xbf16>
    %17 = vector.extract_strided_slice %15 {offsets = [0, 0], sizes = [64, 4], strides = [1, 1]} : vector<64x16xbf16> to vector<64x4xbf16>
    %18 = vector.extract_strided_slice %16 {offsets = [0, 0], sizes = [64, 4], strides = [1, 1]} : vector<64x16xbf16> to vector<64x4xbf16>
    %19 = tpu.concatenate %17, %18 in 1 : vector<64x4xbf16>, vector<64x4xbf16> -> vector<64x8xbf16>
    %20 = vector.extract_strided_slice %10 {offsets = [0, 0], sizes = [4, 64], strides = [1, 1]} : vector<16x64xbf16> to vector<4x64xbf16>
    %21 = vector.extract_strided_slice %8 {offsets = [0, 0], sizes = [4, 64], strides = [1, 1]} : vector<16x64xbf16> to vector<4x64xbf16>
    %22 = tpu.concatenate %20, %21 in 0 : vector<4x64xbf16>, vector<4x64xbf16> -> vector<8x64xbf16>
    %cst_8 = arith.constant dense<0.000000e+00> : vector<64x64xf32>
    %23 = tpu.matmul %19, %22, %cst_8 {dimension_numbers = #tpu.dot_dimension_numbers<[1], [0], [0], [1], [0, 0, 1, 1], [], []>} : vector<64x8xbf16>, vector<8x64xbf16>, vector<64x64xf32> -> vector<64x64xf32>
    %cst_9 = arith.constant dense<0xFF800000> : vector<64xf32>
    %24 = vector.multi_reduction <maximumf>, %23, %cst_9 [1] : vector<64x64xf32> to vector<64xf32>
    %25 = vector.shape_cast %24 : vector<64xf32> to vector<64x1xf32>
    %26 = vector.broadcast %25 : vector<64x1xf32> to vector<64x64xf32>
    %27 = arith.subf %23, %26 : vector<64x64xf32>
    %28 = math.exp %27 : vector<64x64xf32>
    %cst_10 = arith.constant dense<0.000000e+00> : vector<64xf32>
    %29 = vector.multi_reduction <add>, %28, %cst_10 [1] : vector<64x64xf32> to vector<64xf32>
    %30 = vector.shape_cast %29 : vector<64xf32> to vector<64x1xf32>
    %31 = tpu.reciprocal %30 {approx = true} : vector<64x1xf32> -> vector<64x1xf32>
    %32 = vector.broadcast %31 : vector<64x1xf32> to vector<64x64xf32>
    %33 = arith.mulf %28, %32 : vector<64x64xf32>
    %34 = arith.truncf %33 : vector<64x64xf32> to vector<64x64xbf16>
    %35 = vector.extract_strided_slice %12 {offsets = [0, 0], sizes = [4, 64], strides = [1, 1]} : vector<16x64xbf16> to vector<4x64xbf16>
    %cst_11 = arith.constant dense<0.000000e+00> : vector<4x64xf32>
    %36 = tpu.matmul %35, %34, %cst_11 {dimension_numbers = #tpu.dot_dimension_numbers<[1], [1], [0], [0], [0, 0, 1, 0], [], []>} : vector<4x64xbf16>, vector<64x64xbf16>, vector<4x64xf32> -> vector<4x64xf32>
    %c0_12 = arith.constant 0 : index
    %c0_13 = arith.constant 0 : index
    %c0_14 = arith.constant 0 : index
    %37 = vector.load %arg5[%c0_12, %c0_13, %c0_14] : memref<1x16x64xf32, #tpu.memory_space<vmem>>, vector<1x4x64xf32>
    %38 = vector.shape_cast %37 : vector<1x4x64xf32> to vector<4x64xf32>
    %39 = vector.shape_cast %36 : vector<4x64xf32> to vector<1x4x64xf32>
    tpu.vector_store %arg5[%c0_12, %c0_13, %c0_14], %39 {strides = array<i32>} : memref<1x16x64xf32, #tpu.memory_space<vmem>>, vector<1x4x64xf32>,
    %40 = vector.extract_strided_slice %15 {offsets = [0, 4], sizes = [64, 4], strides = [1, 1]} : vector<64x16xbf16> to vector<64x4xbf16>
    %41 = vector.extract_strided_slice %16 {offsets = [0, 4], sizes = [64, 4], strides = [1, 1]} : vector<64x16xbf16> to vector<64x4xbf16>
    %42 = tpu.concatenate %40, %41 in 1 : vector<64x4xbf16>, vector<64x4xbf16> -> vector<64x8xbf16>
    %43 = vector.extract_strided_slice %10 {offsets = [4, 0], sizes = [4, 64], strides = [1, 1]} : vector<16x64xbf16> to vector<4x64xbf16>
    %44 = vector.extract_strided_slice %8 {offsets = [4, 0], sizes = [4, 64], strides = [1, 1]} : vector<16x64xbf16> to vector<4x64xbf16>
    %45 = tpu.concatenate %43, %44 in 0 : vector<4x64xbf16>, vector<4x64xbf16> -> vector<8x64xbf16>
    %cst_15 = arith.constant dense<0.000000e+00> : vector<64x64xf32>
    %46 = tpu.matmul %42, %45, %cst_15 {dimension_numbers = #tpu.dot_dimension_numbers<[1], [0], [0], [1], [0, 0, 1, 1], [], []>} : vector<64x8xbf16>, vector<8x64xbf16>, vector<64x64xf32> -> vector<64x64xf32>
    %cst_16 = arith.constant dense<0xFF800000> : vector<64xf32>
    %47 = vector.multi_reduction <maximumf>, %46, %cst_16 [1] : vector<64x64xf32> to vector<64xf32>
    %48 = vector.shape_cast %47 : vector<64xf32> to vector<64x1xf32>
    %49 = vector.broadcast %48 : vector<64x1xf32> to vector<64x64xf32>
    %50 = arith.subf %46, %49 : vector<64x64xf32>
    %51 = math.exp %50 : vector<64x64xf32>
    %cst_17 = arith.constant dense<0.000000e+00> : vector<64xf32>
    %52 = vector.multi_reduction <add>, %51, %cst_17 [1] : vector<64x64xf32> to vector<64xf32>
    %53 = vector.shape_cast %52 : vector<64xf32> to vector<64x1xf32>
    %54 = tpu.reciprocal %53 {approx = true} : vector<64x1xf32> -> vector<64x1xf32>
    %55 = vector.broadcast %54 : vector<64x1xf32> to vector<64x64xf32>
    %56 = arith.mulf %51, %55 : vector<64x64xf32>
    %57 = arith.truncf %56 : vector<64x64xf32> to vector<64x64xbf16>
    %58 = vector.extract_strided_slice %12 {offsets = [4, 0], sizes = [4, 64], strides = [1, 1]} : vector<16x64xbf16> to vector<4x64xbf16>
    %cst_18 = arith.constant dense<0.000000e+00> : vector<4x64xf32>
    %59 = tpu.matmul %58, %57, %cst_18 {dimension_numbers = #tpu.dot_dimension_numbers<[1], [1], [0], [0], [0, 0, 1, 0], [], []>} : vector<4x64xbf16>, vector<64x64xbf16>, vector<4x64xf32> -> vector<4x64xf32>
    %c0_19 = arith.constant 0 : index
    %c4 = arith.constant 4 : index
    %c0_20 = arith.constant 0 : index
    %60 = vector.load %arg5[%c0_19, %c4, %c0_20] : memref<1x16x64xf32, #tpu.memory_space<vmem>>, vector<1x4x64xf32>
    %61 = vector.shape_cast %60 : vector<1x4x64xf32> to vector<4x64xf32>
    %62 = vector.shape_cast %59 : vector<4x64xf32> to vector<1x4x64xf32>
    tpu.vector_store %arg5[%c0_19, %c4, %c0_20], %62 {strides = array<i32>} : memref<1x16x64xf32, #tpu.memory_space<vmem>>, vector<1x4x64xf32>,
    %63 = vector.extract_strided_slice %15 {offsets = [0, 8], sizes = [64, 4], strides = [1, 1]} : vector<64x16xbf16> to vector<64x4xbf16>
    %64 = vector.extract_strided_slice %16 {offsets = [0, 8], sizes = [64, 4], strides = [1, 1]} : vector<64x16xbf16> to vector<64x4xbf16>
    %65 = tpu.concatenate %63, %64 in 1 : vector<64x4xbf16>, vector<64x4xbf16> -> vector<64x8xbf16>
    %66 = vector.extract_strided_slice %10 {offsets = [8, 0], sizes = [4, 64], strides = [1, 1]} : vector<16x64xbf16> to vector<4x64xbf16>
    %67 = vector.extract_strided_slice %8 {offsets = [8, 0], sizes = [4, 64], strides = [1, 1]} : vector<16x64xbf16> to vector<4x64xbf16>
    %68 = tpu.concatenate %66, %67 in 0 : vector<4x64xbf16>, vector<4x64xbf16> -> vector<8x64xbf16>
    %cst_21 = arith.constant dense<0.000000e+00> : vector<64x64xf32>
    %69 = tpu.matmul %65, %68, %cst_21 {dimension_numbers = #tpu.dot_dimension_numbers<[1], [0], [0], [1], [0, 0, 1, 1], [], []>} : vector<64x8xbf16>, vector<8x64xbf16>, vector<64x64xf32> -> vector<64x64xf32>
    %cst_22 = arith.constant dense<0xFF800000> : vector<64xf32>
    %70 = vector.multi_reduction <maximumf>, %69, %cst_22 [1] : vector<64x64xf32> to vector<64xf32>
    %71 = vector.shape_cast %70 : vector<64xf32> to vector<64x1xf32>
    %72 = vector.broadcast %71 : vector<64x1xf32> to vector<64x64xf32>
    %73 = arith.subf %69, %72 : vector<64x64xf32>
    %74 = math.exp %73 : vector<64x64xf32>
    %cst_23 = arith.constant dense<0.000000e+00> : vector<64xf32>
    %75 = vector.multi_reduction <add>, %74, %cst_23 [1] : vector<64x64xf32> to vector<64xf32>
    %76 = vector.shape_cast %75 : vector<64xf32> to vector<64x1xf32>
    %77 = tpu.reciprocal %76 {approx = true} : vector<64x1xf32> -> vector<64x1xf32>
    %78 = vector.broadcast %77 : vector<64x1xf32> to vector<64x64xf32>
    %79 = arith.mulf %74, %78 : vector<64x64xf32>
    %80 = arith.truncf %79 : vector<64x64xf32> to vector<64x64xbf16>
    %81 = vector.extract_strided_slice %12 {offsets = [8, 0], sizes = [4, 64], strides = [1, 1]} : vector<16x64xbf16> to vector<4x64xbf16>
    %cst_24 = arith.constant dense<0.000000e+00> : vector<4x64xf32>
    %82 = tpu.matmul %81, %80, %cst_24 {dimension_numbers = #tpu.dot_dimension_numbers<[1], [1], [0], [0], [0, 0, 1, 0], [], []>} : vector<4x64xbf16>, vector<64x64xbf16>, vector<4x64xf32> -> vector<4x64xf32>
    %c0_25 = arith.constant 0 : index
    %c8 = arith.constant 8 : index
    %c0_26 = arith.constant 0 : index
    %83 = vector.load %arg5[%c0_25, %c8, %c0_26] : memref<1x16x64xf32, #tpu.memory_space<vmem>>, vector<1x4x64xf32>
    %84 = vector.shape_cast %83 : vector<1x4x64xf32> to vector<4x64xf32>
    %85 = vector.shape_cast %82 : vector<4x64xf32> to vector<1x4x64xf32>
    tpu.vector_store %arg5[%c0_25, %c8, %c0_26], %85 {strides = array<i32>} : memref<1x16x64xf32, #tpu.memory_space<vmem>>, vector<1x4x64xf32>,
    %86 = vector.extract_strided_slice %15 {offsets = [0, 12], sizes = [64, 4], strides = [1, 1]} : vector<64x16xbf16> to vector<64x4xbf16>
    %87 = vector.extract_strided_slice %16 {offsets = [0, 12], sizes = [64, 4], strides = [1, 1]} : vector<64x16xbf16> to vector<64x4xbf16>
    %88 = tpu.concatenate %86, %87 in 1 : vector<64x4xbf16>, vector<64x4xbf16> -> vector<64x8xbf16>
    %89 = vector.extract_strided_slice %10 {offsets = [12, 0], sizes = [4, 64], strides = [1, 1]} : vector<16x64xbf16> to vector<4x64xbf16>
    %90 = vector.extract_strided_slice %8 {offsets = [12, 0], sizes = [4, 64], strides = [1, 1]} : vector<16x64xbf16> to vector<4x64xbf16>
    %91 = tpu.concatenate %89, %90 in 0 : vector<4x64xbf16>, vector<4x64xbf16> -> vector<8x64xbf16>
    %cst_27 = arith.constant dense<0.000000e+00> : vector<64x64xf32>
    %92 = tpu.matmul %88, %91, %cst_27 {dimension_numbers = #tpu.dot_dimension_numbers<[1], [0], [0], [1], [0, 0, 1, 1], [], []>} : vector<64x8xbf16>, vector<8x64xbf16>, vector<64x64xf32> -> vector<64x64xf32>
    %cst_28 = arith.constant dense<0xFF800000> : vector<64xf32>
    %93 = vector.multi_reduction <maximumf>, %92, %cst_28 [1] : vector<64x64xf32> to vector<64xf32>
    %94 = vector.shape_cast %93 : vector<64xf32> to vector<64x1xf32>
    %95 = vector.broadcast %94 : vector<64x1xf32> to vector<64x64xf32>
    %96 = arith.subf %92, %95 : vector<64x64xf32>
    %97 = math.exp %96 : vector<64x64xf32>
    %cst_29 = arith.constant dense<0.000000e+00> : vector<64xf32>
    %98 = vector.multi_reduction <add>, %97, %cst_29 [1] : vector<64x64xf32> to vector<64xf32>
    %99 = vector.shape_cast %98 : vector<64xf32> to vector<64x1xf32>
    %100 = tpu.reciprocal %99 {approx = true} : vector<64x1xf32> -> vector<64x1xf32>
    %101 = vector.broadcast %100 : vector<64x1xf32> to vector<64x64xf32>
    %102 = arith.mulf %97, %101 : vector<64x64xf32>
    %103 = arith.truncf %102 : vector<64x64xf32> to vector<64x64xbf16>
    %104 = vector.extract_strided_slice %12 {offsets = [12, 0], sizes = [4, 64], strides = [1, 1]} : vector<16x64xbf16> to vector<4x64xbf16>
    %cst_30 = arith.constant dense<0.000000e+00> : vector<4x64xf32>
    %105 = tpu.matmul %104, %103, %cst_30 {dimension_numbers = #tpu.dot_dimension_numbers<[1], [1], [0], [0], [0, 0, 1, 0], [], []>} : vector<4x64xbf16>, vector<64x64xbf16>, vector<4x64xf32> -> vector<4x64xf32>
    %c0_31 = arith.constant 0 : index
    %c12 = arith.constant 12 : index
    %c0_32 = arith.constant 0 : index
    %106 = vector.load %arg5[%c0_31, %c12, %c0_32] : memref<1x16x64xf32, #tpu.memory_space<vmem>>, vector<1x4x64xf32>
    %107 = vector.shape_cast %106 : vector<1x4x64xf32> to vector<4x64xf32>
    %108 = vector.shape_cast %105 : vector<4x64xf32> to vector<1x4x64xf32>
    tpu.vector_store %arg5[%c0_31, %c12, %c0_32], %108 {strides = array<i32>} : memref<1x16x64xf32, #tpu.memory_space<vmem>>, vector<1x4x64xf32>,
    return
  }
  func.func @transform_0(%arg0: i32) -> (i32, i32, i32) {
    %c0_i32 = arith.constant 0 : i32
    %c0_i32_0 = arith.constant 0 : i32
    %c0_i32_1 = arith.constant 0 : i32
    return %arg0, %c0_i32, %c0_i32_0 : i32, i32, i32
  }
  func.func @transform_1(%arg0: i32) -> (i32, i32) {
    %c0_i32 = arith.constant 0 : i32
    %c0_i32_0 = arith.constant 0 : i32
    %c0_i32_1 = arith.constant 0 : i32
    return %c0_i32, %c0_i32_0 : i32, i32
  }
  func.func @transform_2(%arg0: i32) -> (i32, i32) {
    %c0_i32 = arith.constant 0 : i32
    %c0_i32_0 = arith.constant 0 : i32
    %c0_i32_1 = arith.constant 0 : i32
    return %c0_i32, %c0_i32_0 : i32, i32
  }
  func.func @transform_3(%arg0: i32) -> (i32, i32) {
    %c0_i32 = arith.constant 0 : i32
    %c0_i32_0 = arith.constant 0 : i32
    %c0_i32_1 = arith.constant 0 : i32
    return %c0_i32, %c0_i32_0 : i32, i32
  }
  func.func @transform_4(%arg0: i32) -> (i32, i32, i32) {
    %c0_i32 = arith.constant 0 : i32
    %c0_i32_0 = arith.constant 0 : i32
    %c0_i32_1 = arith.constant 0 : i32
    return %arg0, %c0_i32, %c0_i32_0 : i32, i32, i32
  }
}

</mosaic_0001>

<llo_original>
// kernel: tpu_custom_call.1
$region0: #{tpu_custom_call.1}
  #allocation0 [shape = 'u32[]', space=smem, size = 0x4, offset = 0x4, fixed_abs, tag = 'smem constant byte address 0x4 - core index']
  #allocation1 [shape = 'u32[144,128]{1,0:T(1,128)}', space=vmem, size = 0x12000, scoped, tag = 'internal scratch']
  %s0 = inlined_call_operand.vmem [shape: bf16[2,16,64], index: 0, kind: input, shape index: {}]
  %s1 = inlined_call_operand.vmem [shape: bf16[48,16], index: 1, kind: input, shape index: {}]
  %s2 = inlined_call_operand.vmem [shape: f32[48,1], index: 2, kind: input, shape index: {}]
  %s3 = inlined_call_operand.vmem [shape: bf16[64,16], index: 3, kind: input, shape index: {}]
  %s4 = inlined_call_operand.hbm [shape: f32[2,16,64], index: 4, kind: output, shape index: {}]
  %s5 = sld [smem:[#allocation0]]
  $region49: #{tpu_custom_call.1} parent=0
    _
  %s7 = ssub.s32 1, %s5
  %s8 = scalar_select 0, %s7, %s5
  $region1: #{tpu_custom_call.1} parent=0
    #allocation2 [shape = 'u8[16384]{0}', space=vmem, size = 0x4000, scoped, tag = 'output window, operand 0']
    #allocation3 [shape = 's32[2]{0}', space=sflag, size = 0x8, scoped, tag = 'scoped memory for tpu_custom_call.1']
    %9 = vsyncpa [#allocation3], 0
    %s10 = scalar_lea.sflag [#allocation3], 1
    %11 = vsyncpa %s10, 0
    loop: start=0, step=1, limit=4
    $region2: #{tpu_custom_call.1} parent=1 // loop_pre_header
      _
    $region3: #{tpu_custom_call.1} parent=1 // loop_header
      %s13 = sphi 0, %s17
      %p14 = scmp.ge.s32.totalorder %s13, 4
      %s23 = sphi 0, %s25
      %s26 = sphi 0, %s23
      %s27 = sphi 0, %s26
      %s43 = sphi 0, %s27
      %s47 = sphi 0, %s47
      %s49 = sphi 0, %s47
      %s50 = sphi 0, %s49
      %s64 = sphi 0, %s50
      %s68 = sphi 0, %s68
      %s70 = sphi 0, %s68
      %s71 = sphi 0, %s70
      %s85 = sphi 0, %s71
      %s89 = sphi 0, %s89
      %s91 = sphi 0, %s89
      %s92 = sphi 0, %s91
      %s106 = sphi 0, %s92
      %s112 = sphi 0, %s114
      %s115 = sphi 0, %s112
      %s116 = sphi 0, %s115
      %s132 = sphi 0, %s116
    $region4: #{tpu_custom_call.1} parent=1 // loop_header_branch
      %16 = sbr.rel (%p14) target = $region8
    $region5: #{tpu_custom_call.1} parent=1 // loop_body
      %s18 = ssub.s32 %s13, 1
      %s19 = ssub.s32 %s13, 2
      %s20 = sadd.s32 %s13, 1
      %s21 = ssub.s32 %s13, %s20
      %p22 = scmp.eq.s32.totalorder %s21, 0
      %s24 = sadd.s32 %s23, 1
      %s25 = scalar_select %p22, %s23, %s24
      %p28 = pneg %p22
      %p29 = scmp.eq.s32.totalorder %s13, 1
      %p30 = por %p28, %p29
      %p31 = scmp.ne.s32.totalorder %s23, %s26
      %p32 = scmp.eq.s32.totalorder %s13, 0
      %p33 = por %p31, %p32
      %p34 = scmp.ne.s32.totalorder %s23, %s26
      %p35 = scmp.eq.s32.totalorder %s18, 1
      %p36 = por %p34, %p35
      %p37 = scmp.ne.s32.totalorder %s26, %s27
      %p38 = scmp.eq.s32.totalorder %s18, 0
      %p39 = por %p37, %p38
      %p40 = scmp.ne.s32.totalorder %s26, %s27
      %p41 = scmp.eq.s32.totalorder %s19, 1
      %p42 = por %p40, %p41
      %p44 = scmp.ne.s32.totalorder %s27, %s43
      %p45 = scmp.eq.s32.totalorder %s19, 0
      %p46 = por %p44, %p45
      %s48 = sadd.s32 %s47, 1
      %p51 = scmp.eq.s32.totalorder %s13, 1
      %p52 = scmp.ne.s32.totalorder %s47, %s49
      %p53 = scmp.eq.s32.totalorder %s13, 0
      %p54 = por %p52, %p53
      %p55 = scmp.ne.s32.totalorder %s47, %s49
      %p56 = scmp.eq.s32.totalorder %s18, 1
      %p57 = por %p55, %p56
      %p58 = scmp.ne.s32.totalorder %s49, %s50
      %p59 = scmp.eq.s32.totalorder %s18, 0
      %p60 = por %p58, %p59
      %p61 = scmp.ne.s32.totalorder %s49, %s50
      %p62 = scmp.eq.s32.totalorder %s19, 1
      %p63 = por %p61, %p62
      %p65 = scmp.ne.s32.totalorder %s50, %s64
      %p66 = scmp.eq.s32.totalorder %s19, 0
      %p67 = por %p65, %p66
      %s69 = sadd.s32 %s68, 1
      %p72 = scmp.eq.s32.totalorder %s13, 1
      %p73 = scmp.ne.s32.totalorder %s68, %s70
      %p74 = scmp.eq.s32.totalorder %s13, 0
      %p75 = por %p73, %p74
      %p76 = scmp.ne.s32.totalorder %s68, %s70
      %p77 = scmp.eq.s32.totalorder %s18, 1
      %p78 = por %p76, %p77
      %p79 = scmp.ne.s32.totalorder %s70, %s71
      %p80 = scmp.eq.s32.totalorder %s18, 0
      %p81 = por %p79, %p80
      %p82 = scmp.ne.s32.totalorder %s70, %s71
      %p83 = scmp.eq.s32.totalorder %s19, 1
      %p84 = por %p82, %p83
      %p86 = scmp.ne.s32.totalorder %s71, %s85
      %p87 = scmp.eq.s32.totalorder %s19, 0
      %p88 = por %p86, %p87
      %s90 = sadd.s32 %s89, 1
      %p93 = scmp.eq.s32.totalorder %s13, 1
      %p94 = scmp.ne.s32.totalorder %s89, %s91
      %p95 = scmp.eq.s32.totalorder %s13, 0
      %p96 = por %p94, %p95
      %p97 = scmp.ne.s32.totalorder %s89, %s91
      %p98 = scmp.eq.s32.totalorder %s18, 1
      %p99 = por %p97, %p98
      %p100 = scmp.ne.s32.totalorder %s91, %s92
      %p101 = scmp.eq.s32.totalorder %s18, 0
      %p102 = por %p100, %p101
      %p103 = scmp.ne.s32.totalorder %s91, %s92
      %p104 = scmp.eq.s32.totalorder %s19, 1
      %p105 = por %p103, %p104
      %p107 = scmp.ne.s32.totalorder %s92, %s106
      %p108 = scmp.eq.s32.totalorder %s19, 0
      %p109 = por %p107, %p108
      %s110 = ssub.s32 %s13, %s20
      %p111 = scmp.eq.s32.totalorder %s110, 0
      %s113 = sadd.s32 %s112, 1
      %s114 = scalar_select %p111, %s112, %s113
      %p117 = pneg %p111
      %p118 = scmp.eq.s32.totalorder %s13, 1
      %p119 = por %p117, %p118
      %p120 = scmp.ne.s32.totalorder %s112, %s115
      %p121 = scmp.eq.s32.totalorder %s13, 0
      %p122 = por %p120, %p121
      %p123 = scmp.ne.s32.totalorder %s112, %s115
      %p124 = scmp.eq.s32.totalorder %s18, 1
      %p125 = por %p123, %p124
      %p126 = scmp.ne.s32.totalorder %s115, %s116
      %p127 = scmp.eq.s32.totalorder %s18, 0
      %p128 = por %p126, %p127
      %p129 = scmp.ne.s32.totalorder %s115, %s116
      %p130 = scmp.eq.s32.totalorder %s19, 1
      %p131 = por %p129, %p130
      %p133 = scmp.ne.s32.totalorder %s116, %s132
      %p134 = scmp.eq.s32.totalorder %s19, 0
      %p135 = por %p133, %p134
      %p136 = scmp.le.s32.totalorder 1, %s13
      %p137 = scmp.lt.s32.totalorder %s13, 3
      %p138 = pnand %p136, %p137
      %p139 = pneg %p138
      // Predicated region
      $region9: #{tpu_custom_call.1} parent=5 // pred_check
        _
      $region10: #{tpu_custom_call.1} parent=5 // pred_check_branch
        %141 = sbr.rel (%p138) target = $region12
      $region11: #{tpu_custom_call.1} parent=5 // pred_region
        %s142 = ssub.s32 %s13, 1
        // Predicated region
        $region13: #{tpu_custom_call.1} parent=11 // pred_check
          %p143 = pneg %p60
        $region14: #{tpu_custom_call.1} parent=11 // pred_check_branch
          %145 = sbr.rel (%p143) target = $region16
        $region15: #{tpu_custom_call.1} parent=11 // pred_region
          _
        $region16: #{tpu_custom_call.1} parent=11 // pred_fallthru
          _
        // Predicated region
        $region17: #{tpu_custom_call.1} parent=11 // pred_check
          %p146 = pneg %p81
        $region18: #{tpu_custom_call.1} parent=11 // pred_check_branch
          %148 = sbr.rel (%p146) target = $region20
        $region19: #{tpu_custom_call.1} parent=11 // pred_region
          _
        $region20: #{tpu_custom_call.1} parent=11 // pred_fallthru
          _
        // Predicated region
        $region21: #{tpu_custom_call.1} parent=11 // pred_check
          %p149 = pneg %p102
        $region22: #{tpu_custom_call.1} parent=11 // pred_check_branch
          %151 = sbr.rel (%p149) target = $region24
        $region23: #{tpu_custom_call.1} parent=11 // pred_region
          _
        $region24: #{tpu_custom_call.1} parent=11 // pred_fallthru
          _
      $region12: #{tpu_custom_call.1} parent=5 // pred_fallthru
        _
      %p152 = scmp.lt.s32.totalorder %s13, 2
      // Predicated region
      $region25: #{tpu_custom_call.1} parent=5 // pred_check
        %p153 = pneg %p152
      $region26: #{tpu_custom_call.1} parent=5 // pred_check_branch
        %155 = sbr.rel (%p153) target = $region28
      $region27: #{tpu_custom_call.1} parent=5 // pred_region
        // Predicated region
        $region29: #{tpu_custom_call.1} parent=27 // pred_check
          %p156 = pneg %p33
        $region30: #{tpu_custom_call.1} parent=27 // pred_check_branch
          %158 = sbr.rel (%p156) target = $region32
        $region31: #{tpu_custom_call.1} parent=27 // pred_region
          %p159 = scmp.lt.s32.totalorder %s13, 1
          %s160 = scalar_select %p159, %s13, 1
          %s161 = smul.addr %s160, 2
          %s162 = smul.addr %s161, 4
          %s163 = scalar_lea.vmem %s0, %s162
        $region32: #{tpu_custom_call.1} parent=27 // pred_fallthru
          _
      $region28: #{tpu_custom_call.1} parent=5 // pred_fallthru
        _
      %p164 = scmp.le.s32.totalorder 1, %s13
      %p165 = scmp.lt.s32.totalorder %s13, 3
      %p166 = pnand %p164, %p165
      %p167 = pneg %p166
      // Predicated region
      $region33: #{tpu_custom_call.1} parent=5 // pred_check
        _
      $region34: #{tpu_custom_call.1} parent=5 // pred_check_branch
        %169 = sbr.rel (%p166) target = $region36
      $region35: #{tpu_custom_call.1} parent=5 // pred_region
        %s170 = ssub.s32 %s13, 1
        %p171 = scmp.lt.s32.totalorder %s18, 1
        %s172 = scalar_select %p171, %s18, 1
        %s173 = smul.addr %s172, 2
        %s174 = smul.addr %s173, 4
        %s175 = scalar_lea.vmem %s0, %s174
        %p176 = pneg %p39
        %p177 = pneg %p36
        %p178 = pneg %p60
        %p179 = pneg %p57
        %p180 = pneg %p81
        %p181 = pneg %p78
        %p182 = pneg %p102
        %p183 = pneg %p99
        %p184 = pneg %p128
        %p185 = pneg %p125
        %s186 = sand.u32 %s115, 1
        %s187 = scalar_lea.sflag [#allocation3], %s186
        %s188 = sand.u32 %s115, 1
        %s189 = smul.addr %s188, 16
        %s190 = scalar_lea.vmem [#allocation2], %s189
        %p191 = scmp.lt.s32.totalorder %s18, 1
        %s192 = scalar_select %p191, %s18, 1
        %s193 = smul.addr %s192, 2
        %s194 = smul.addr %s193, 4
        %s195 = scalar_lea.vmem %s0, %s194
        %v197 = vld [vmem:[%s195] sm:$0xf]
        %v198 = vld [vmem:[%s195 + $0x4] sm:$0xf]
        %v199 = vld [vmem:[%s1] sm:$0xf]
        %v200 = vld [vmem:[%s1 + $0x4] sm:$0xf]
        %v201 = vld [vmem:[%s1 + $0x8] sm:$0xf]
        %v202 = vld [vmem:[%s1 + $0xc] sm:$0xf]
        %v203 = vld [vmem:[%s1 + $0x10] sm:$0xf]
        %v204 = vld [vmem:[%s1 + $0x14] sm:$0xf]
        %v205 = vld [vmem:[%s2] sm:$0xff]
        %v206 = vld [vmem:[%s2 + $0x8] sm:$0xff]
        %v207 = vld [vmem:[%s2 + $0x10] sm:$0xff]
        %v208 = vld [vmem:[%s2 + $0x18] sm:$0xff]
        %v209 = vld [vmem:[%s2 + $0x20] sm:$0xff]
        %v210 = vld [vmem:[%s2 + $0x28] sm:$0xff]
        %212 = vset.pattern.permute.xlu0 0
        %213 = vperm.xlu0 %212, %v205
        %v214 = vpop.permute.xlu0 %213
        %217 = vset.pattern.permute.xlu0 0
        %218 = vperm.xlu0 %217, %v206
        %v219 = vpop.permute.xlu0 %218
        %222 = vset.pattern.permute.xlu0 0
        %223 = vperm.xlu0 %222, %v207
        %v224 = vpop.permute.xlu0 %223
        %227 = vset.pattern.permute.xlu0 0
        %228 = vperm.xlu0 %227, %v208
        %v229 = vpop.permute.xlu0 %228
        %232 = vset.pattern.permute.xlu0 0
        %233 = vperm.xlu0 %232, %v209
        %v234 = vpop.permute.xlu0 %233
        %237 = vset.pattern.permute.xlu0 0
        %238 = vperm.xlu0 %237, %v210
        %v239 = vpop.permute.xlu0 %238
        %v247 = vunpack.c.l.b16 %v199
        %v248 = vunpack.c.l.b16 %v200
        %v249 = vunpack.c.l.b16 %v201
        %v250 = vunpack.c.l.b16 %v202
        %v251 = vunpack.c.l.b16 %v203
        %v252 = vunpack.c.l.b16 %v204
        %v253 = vpack.c.b16 %v248, %v247
        %v254 = vpack.c.b16 %v250, %v249
        %v255 = vpack.c.b16 %v252, %v251
        %v258 = vunpack.c.l.b16 %v197
        %v259 = vunpack.c.l.b16 %v198
        %v260 = vpack.c.b16 %v259, %v258
        %vm262 = vcmask 130048
        %v264 = vsel %vm262, %v253, 0
        %v267 = vsel %vm262, %v254, 0
        %v270 = vsel %vm262, %v255, 0
        %272 = vmatprep.subr.bf16.mxu0 0
        %273 = vmatpush1.bf16.msra.mxu0 %v260
        %274 = vmatprep.subr.bf16.mxu0 0
        %275 = vmatpush1.bf16.msra.mxu0 0
        %276 = vmatprep.subr.bf16.mxu0 0
        %277 = vmatpush1.bf16.msra.mxu0 0
        %278 = vmatprep.subr.bf16.mxu0 0
        %279 = vmatpush1.bf16.msra.mxu0 0
        %280 = vmatprep.subr.bf16.mxu0 0
        %281 = vmatpush1.bf16.msra.mxu0 0
        %282 = vmatprep.subr.bf16.mxu0 0
        %283 = vmatpush1.bf16.msra.mxu0 0
        %284 = vmatprep.subr.bf16.mxu0 0
        %285 = vmatpush1.bf16.msra.mxu0 0
        %286 = vmatprep.subr.bf16.mxu0 0
        %287 = vmatpush1.bf16.msra.mxu0 0
        %288 = vmatprep.subr.bf16.mxu0 0
        %289 = vmatpush1.bf16.msra.mxu0 0
        %290 = vmatprep.subr.bf16.mxu0 0
        %291 = vmatpush1.bf16.msra.mxu0 0
        %292 = vmatprep.subr.bf16.mxu0 0
        %293 = vmatpush1.bf16.msra.mxu0 0
        %294 = vmatprep.subr.bf16.mxu0 0
        %295 = vmatpush1.bf16.msra.mxu0 0
        %296 = vmatprep.subr.bf16.mxu0 0
        %297 = vmatpush1.bf16.msra.mxu0 0
        %298 = vmatprep.subr.bf16.mxu0 0
        %299 = vmatpush1.bf16.msra.mxu0 0
        %300 = vmatprep.subr.bf16.mxu0 0
        %301 = vmatpush1.bf16.msra.mxu0 0
        %302 = vmatprep.subr.bf16.mxu0 0
        %303 = vmatpush1.bf16.msra.mxu0 0
        %304 = vmatprep.mubr.bf16.mxu0 0
        %305 = vmatmul.mubr.bf16.gmra.mrb[0].mxu0 %v264
        %v306 = vpop.f32.mrb[0].mxu0
        %v307 = vadd.f32 %v214, %v306
        %v308 = vpop.f32.mrb[0].mxu0
        %v309 = vpop.f32.mrb[0].mxu0
        %v310 = vadd.f32 %v219, %v309
        %v311 = vpop.f32.mrb[0].mxu0
        %312 = vmatprep.mubr.bf16.mxu0 0
        %313 = vmatmul.mubr.bf16.gmra.mrb[0].mxu0 %v267
        %v314 = vpop.f32.mrb[0].mxu0
        %v315 = vadd.f32 %v224, %v314
        %v316 = vpop.f32.mrb[0].mxu0
        %v317 = vpop.f32.mrb[0].mxu0
        %v318 = vadd.f32 %v229, %v317
        %v319 = vpop.f32.mrb[0].mxu0
        %320 = vmatprep.mubr.bf16.mxu0 0
        %321 = vmatmul.mubr.bf16.gmra.mrb[0].mxu0 %v270
        %v322 = vpop.f32.mrb[0].mxu0
        %v323 = vadd.f32 %v234, %v322
        %v324 = vpop.f32.mrb[0].mxu0
        %v325 = vpop.f32.mrb[0].mxu0
        %v326 = vadd.f32 %v239, %v325
        %v327 = vpop.f32.mrb[0].mxu0
        %328 = vdwg.mxu0
        %v329 = vpack.c.bf16 %v310, %v307
        %v330 = vpack.c.bf16 %v318, %v315
        %v331 = vpack.c.bf16 %v326, %v323
        %332 = vxpose.xlu0.b32.start [1/16] %v307, 128
        %333 = vxpose.xlu0.b32.cont [2/16] %v310, 128
        %334 = vxpose.xlu0.b32.cont [3/16] 0.0, 128
        %335 = vxpose.xlu0.b32.cont [4/16] 0.0, 128
        %336 = vxpose.xlu0.b32.cont [5/16] 0.0, 128
        %337 = vxpose.xlu0.b32.cont [6/16] 0.0, 128
        %338 = vxpose.xlu0.b32.cont [7/16] 0.0, 128
        %339 = vxpose.xlu0.b32.cont [8/16] 0.0, 128
        %340 = vxpose.xlu0.b32.cont [9/16] 0.0, 128
        %341 = vxpose.xlu0.b32.cont [10/16] 0.0, 128
        %342 = vxpose.xlu0.b32.cont [11/16] 0.0, 128
        %343 = vxpose.xlu0.b32.cont [12/16] 0.0, 128
        %344 = vxpose.xlu0.b32.cont [13/16] 0.0, 128
        %345 = vxpose.xlu0.b32.cont [14/16] 0.0, 128
        %346 = vxpose.xlu0.b32.cont [15/16] 0.0, 128
        %347 = vxpose.xlu0.b32.end [16/16] 0.0, 128
        %v348 = vpop.trf.xlu0
        %v349 = vpop.trf.xlu0
        %v350 = vpop.trf.xlu0
        %v351 = vpop.trf.xlu0
        %v352 = vpop.trf.xlu0
        %v353 = vpop.trf.xlu0
        %v354 = vpop.trf.xlu0
        %v355 = vpop.trf.xlu0
        %v356 = vpop.trf.xlu0
        %v357 = vpop.trf.xlu0
        %v358 = vpop.trf.xlu0
        %v359 = vpop.trf.xlu0
        %v360 = vpop.trf.xlu0
        %v361 = vpop.trf.xlu0
        %v362 = vpop.trf.xlu0
        %v363 = vpop.trf.xlu0
        %v364 = vpack.c.bf16 %v349, %v348
        %v365 = vpack.c.bf16 %v351, %v350
        %v366 = vpack.c.bf16 %v353, %v352
        %v367 = vpack.c.bf16 %v355, %v354
        %v368 = vld [vmem:[%s3] sm:$0xf]
        %v369 = vld [vmem:[%s3 + $0x4] sm:$0xf]
        %v370 = vld [vmem:[%s3 + $0x8] sm:$0xf]
        %v371 = vld [vmem:[%s3 + $0xc] sm:$0xf]
        %v372 = vld [vmem:[%s3 + $0x10] sm:$0xf]
        %v373 = vld [vmem:[%s3 + $0x14] sm:$0xf]
        %v374 = vld [vmem:[%s3 + $0x18] sm:$0xf]
        %v375 = vld [vmem:[%s3 + $0x1c] sm:$0xf]
        %v384 = vunpack.c.l.b16 %v368
        %v385 = vunpack.c.l.b16 %v369
        %v386 = vunpack.c.l.b16 %v370
        %v387 = vunpack.c.l.b16 %v371
        %v388 = vunpack.c.l.b16 %v372
        %v389 = vunpack.c.l.b16 %v373
        %v390 = vunpack.c.l.b16 %v374
        %v391 = vunpack.c.l.b16 %v375
        %v392 = vpack.c.b16 %v385, %v384
        %v393 = vpack.c.b16 %v387, %v386
        %v394 = vpack.c.b16 %v389, %v388
        %v395 = vpack.c.b16 %v391, %v390
        %396 = vrot.lane.b32.xlu0 %v392, 4
        %v397 = vpop.permute.xlu0 %396
        %398 = vrot.lane.b32.xlu0 %v393, 4
        %v399 = vpop.permute.xlu0 %398
        %400 = vrot.lane.b32.xlu0 %v394, 4
        %v401 = vpop.permute.xlu0 %400
        %402 = vrot.lane.b32.xlu0 %v395, 4
        %v403 = vpop.permute.xlu0 %402
        %vm404 = vcmask 31744
        %v407 = vsel %vm404, %v364, %v397
        %v410 = vsel %vm404, %v365, %v399
        %v413 = vsel %vm404, %v366, %v401
        %v416 = vsel %vm404, %v367, %v403
        %v418 = vrot.slane %v329, 6
        %vm419 = vcmask 1041408
        %v422 = vsel %vm419, %v330, %v418
        %vm423 = vcmask 64512
        %v424 = vsel %vm423, %v407, 0
        %v426 = vsel %vm423, %v410, 0
        %v428 = vsel %vm423, %v413, 0
        %v430 = vsel %vm423, %v416, 0
        %vm432 = vcmask 1043456
        %v433 = vsel %vm432, %v422, 0
        %435 = vmatprep.subr.bf16.mxu0 0
        %436 = vmatpush1.bf16.msra.mxu0 %v433
        %437 = vmatprep.subr.bf16.mxu0 0
        %438 = vmatpush1.bf16.msra.mxu0 0
        %439 = vmatprep.subr.bf16.mxu0 0
        %440 = vmatpush1.bf16.msra.mxu0 0
        %441 = vmatprep.subr.bf16.mxu0 0
        %442 = vmatpush1.bf16.msra.mxu0 0
        %443 = vmatprep.subr.bf16.mxu0 0
        %444 = vmatpush1.bf16.msra.mxu0 0
        %445 = vmatprep.subr.bf16.mxu0 0
        %446 = vmatpush1.bf16.msra.mxu0 0
        %447 = vmatprep.subr.bf16.mxu0 0
        %448 = vmatpush1.bf16.msra.mxu0 0
        %449 = vmatprep.subr.bf16.mxu0 0
        %450 = vmatpush1.bf16.msra.mxu0 0
        %451 = vmatprep.subr.bf16.mxu0 0
        %452 = vmatpush1.bf16.msra.mxu0 0
        %453 = vmatprep.subr.bf16.mxu0 0
        %454 = vmatpush1.bf16.msra.mxu0 0
        %455 = vmatprep.subr.bf16.mxu0 0
        %456 = vmatpush1.bf16.msra.mxu0 0
        %457 = vmatprep.subr.bf16.mxu0 0
        %458 = vmatpush1.bf16.msra.mxu0 0
        %459 = vmatprep.subr.bf16.mxu0 0
        %460 = vmatpush1.bf16.msra.mxu0 0
        %461 = vmatprep.subr.bf16.mxu0 0
        %462 = vmatpush1.bf16.msra.mxu0 0
        %463 = vmatprep.subr.bf16.mxu0 0
        %464 = vmatpush1.bf16.msra.mxu0 0
        %465 = vmatprep.subr.bf16.mxu0 0
        %466 = vmatpush1.bf16.msra.mxu0 0
        %467 = vmatprep.mubr.bf16.mxu0 0
        %468 = vmatmul.mubr.bf16.gmra.mrb[0].mxu0 %v424
        %v469 = vpop.f32.mrb[0].mxu0
        %v470 = vadd.f32 0.0, %v469
        %v471 = vpop.f32.mrb[0].mxu0
        %v472 = vpop.f32.mrb[0].mxu0
        %v473 = vadd.f32 0.0, %v472
        %v474 = vpop.f32.mrb[0].mxu0
        %475 = vmatprep.mubr.bf16.mxu0 0
        %476 = vmatmul.mubr.bf16.gmra.mrb[0].mxu0 %v426
        %v477 = vpop.f32.mrb[0].mxu0
        %v478 = vadd.f32 0.0, %v477
        %v479 = vpop.f32.mrb[0].mxu0
        %v480 = vpop.f32.mrb[0].mxu0
        %v481 = vadd.f32 0.0, %v480
        %v482 = vpop.f32.mrb[0].mxu0
        %483 = vmatprep.mubr.bf16.mxu0 0
        %484 = vmatmul.mubr.bf16.gmra.mrb[0].mxu0 %v428
        %v485 = vpop.f32.mrb[0].mxu0
        %v486 = vadd.f32 0.0, %v485
        %v487 = vpop.f32.mrb[0].mxu0
        %v488 = vpop.f32.mrb[0].mxu0
        %v489 = vadd.f32 0.0, %v488
        %v490 = vpop.f32.mrb[0].mxu0
        %491 = vmatprep.mubr.bf16.mxu0 0
        %492 = vmatmul.mubr.bf16.gmra.mrb[0].mxu0 %v430
        %v493 = vpop.f32.mrb[0].mxu0
        %v494 = vadd.f32 0.0, %v493
        %v495 = vpop.f32.mrb[0].mxu0
        %v496 = vpop.f32.mrb[0].mxu0
        %v497 = vadd.f32 0.0, %v496
        %v498 = vpop.f32.mrb[0].mxu0
        %499 = vdwg.mxu0
        %vm500 = vcmask 523264
        %v501 = vsel %vm500, %v470, -inf
        %502 = vmax.xlane.f32.xlu0 %v501
        %v503 = vpop.xlane.xlu0 %502
        %v504 = vsel %vm500, %v473, -inf
        %505 = vmax.xlane.f32.xlu0 %v504
        %v506 = vpop.xlane.xlu0 %505
        %v507 = vsel %vm500, %v478, -inf
        %508 = vmax.xlane.f32.xlu0 %v507
        %v509 = vpop.xlane.xlu0 %508
        %v510 = vsel %vm500, %v481, -inf
        %511 = vmax.xlane.f32.xlu0 %v510
        %v512 = vpop.xlane.xlu0 %511
        %v513 = vsel %vm500, %v486, -inf
        %514 = vmax.xlane.f32.xlu0 %v513
        %v515 = vpop.xlane.xlu0 %514
        %v516 = vsel %vm500, %v489, -inf
        %517 = vmax.xlane.f32.xlu0 %v516
        %v518 = vpop.xlane.xlu0 %517
        %v519 = vsel %vm500, %v494, -inf
        %520 = vmax.xlane.f32.xlu0 %v519
        %v521 = vpop.xlane.xlu0 %520
        %v522 = vsel %vm500, %v497, -inf
        %523 = vmax.xlane.f32.xlu0 %v522
        %v524 = vpop.xlane.xlu0 %523
        %v525 = vsub.f32 %v470, %v503
        %v526 = vsub.f32 %v473, %v506
        %v527 = vsub.f32 %v478, %v509
        %v528 = vsub.f32 %v481, %v512
        %v529 = vsub.f32 %v486, %v515
        %v530 = vsub.f32 %v489, %v518
        %v531 = vsub.f32 %v494, %v521
        %v532 = vsub.f32 %v497, %v524
        %v533 = vmul.f32 %v525, 1.442695
        %v534 = vpow.pop %v533
        %v535 = vmul.f32 %v526, 1.442695
        %v536 = vpow.pop %v535
        %v537 = vmul.f32 %v527, 1.442695
        %v538 = vpow.pop %v537
        %v539 = vmul.f32 %v528, 1.442695
        %v540 = vpow.pop %v539
        %v541 = vmul.f32 %v529, 1.442695
        %v542 = vpow.pop %v541
        %v543 = vmul.f32 %v530, 1.442695
        %v544 = vpow.pop %v543
        %v545 = vmul.f32 %v531, 1.442695
        %v546 = vpow.pop %v545
        %v547 = vmul.f32 %v532, 1.442695
        %v548 = vpow.pop %v547
        %v549 = vsel %vm500, %v534, 0.0
        %550 = vadd.xlane.f32.xlu0 %v549
        %v551 = vpop.xlane.xlu0 %550
        %v552 = vsel %vm500, %v536, 0.0
        %553 = vadd.xlane.f32.xlu0 %v552
        %v554 = vpop.xlane.xlu0 %553
        %v555 = vsel %vm500, %v538, 0.0
        %556 = vadd.xlane.f32.xlu0 %v555
        %v557 = vpop.xlane.xlu0 %556
        %v558 = vsel %vm500, %v540, 0.0
        %559 = vadd.xlane.f32.xlu0 %v558
        %v560 = vpop.xlane.xlu0 %559
        %v561 = vsel %vm500, %v542, 0.0
        %562 = vadd.xlane.f32.xlu0 %v561
        %v563 = vpop.xlane.xlu0 %562
        %v564 = vsel %vm500, %v544, 0.0
        %565 = vadd.xlane.f32.xlu0 %v564
        %v566 = vpop.xlane.xlu0 %565
        %v567 = vsel %vm500, %v546, 0.0
        %568 = vadd.xlane.f32.xlu0 %v567
        %v569 = vpop.xlane.xlu0 %568
        %v570 = vsel %vm500, %v548, 0.0
        %571 = vadd.xlane.f32.xlu0 %v570
        %v572 = vpop.xlane.xlu0 %571
        %v573 = vrcp.pop %v551
        %v574 = vrcp.pop %v554
        %v575 = vrcp.pop %v557
        %v576 = vrcp.pop %v560
        %v577 = vrcp.pop %v563
        %v578 = vrcp.pop %v566
        %v579 = vrcp.pop %v569
        %v580 = vrcp.pop %v572
        %v581 = vmul.f32 %v534, %v573
        %v582 = vmul.f32 %v536, %v574
        %v583 = vmul.f32 %v538, %v575
        %v584 = vmul.f32 %v540, %v576
        %v585 = vmul.f32 %v542, %v577
        %v586 = vmul.f32 %v544, %v578
        %v587 = vmul.f32 %v546, %v579
        %v588 = vmul.f32 %v548, %v580
        %v589 = vpack.c.bf16 %v582, %v581
        %v590 = vpack.c.bf16 %v584, %v583
        %v591 = vpack.c.bf16 %v586, %v585
        %v592 = vpack.c.bf16 %v588, %v587
        %v594 = vsel %vm500, %v331, 0
        %v597 = vsel %vm500, %v589, 0
        %v600 = vsel %vm500, %v590, 0
        %v603 = vsel %vm500, %v591, 0
        %v606 = vsel %vm500, %v592, 0
        %608 = vmatprep.subr.bf16.mxu0 0
        %609 = vmatpush1.bf16.xpose.msra.mxu0 %v597
        %610 = vmatprep.subr.bf16.mxu0 0
        %611 = vmatpush1.bf16.xpose.msra.mxu0 %v600
        %612 = vmatprep.subr.bf16.mxu0 0
        %613 = vmatpush1.bf16.xpose.msra.mxu0 %v603
        %614 = vmatprep.subr.bf16.mxu0 0
        %615 = vmatpush1.bf16.xpose.msra.mxu0 %v606
        %616 = vmatprep.subr.bf16.mxu0 0
        %617 = vmatpush1.bf16.xpose.msra.mxu0 0
        %618 = vmatprep.subr.bf16.mxu0 0
        %619 = vmatpush1.bf16.xpose.msra.mxu0 0
        %620 = vmatprep.subr.bf16.mxu0 0
        %621 = vmatpush1.bf16.xpose.msra.mxu0 0
        %622 = vmatprep.subr.bf16.mxu0 0
        %623 = vmatpush1.bf16.xpose.msra.mxu0 0
        %624 = vmatprep.subr.bf16.mxu0 0
        %625 = vmatpush1.bf16.xpose.msra.mxu0 0
        %626 = vmatprep.subr.bf16.mxu0 0
        %627 = vmatpush1.bf16.xpose.msra.mxu0 0
        %628 = vmatprep.subr.bf16.mxu0 0
        %629 = vmatpush1.bf16.xpose.msra.mxu0 0
        %630 = vmatprep.subr.bf16.mxu0 0
        %631 = vmatpush1.bf16.xpose.msra.mxu0 0
        %632 = vmatprep.subr.bf16.mxu0 0
        %633 = vmatpush1.bf16.xpose.msra.mxu0 0
        %634 = vmatprep.subr.bf16.mxu0 0
        %635 = vmatpush1.bf16.xpose.msra.mxu0 0
        %636 = vmatprep.subr.bf16.mxu0 0
        %637 = vmatpush1.bf16.xpose.msra.mxu0 0
        %638 = vmatprep.subr.bf16.mxu0 0
        %639 = vmatpush1.bf16.xpose.msra.mxu0 0
        %640 = vmatprep.mubr.bf16.mxu0 0
        %641 = vmatmul.mubr.bf16.gmra.mrb[0].mxu0 %v594
        %v642 = vpop.f32.mrb[0].mxu0
        %v643 = vadd.f32 0.0, %v642
        %v644 = vpop.f32.mrb[0].mxu0
        %v645 = vpop.f32.mrb[0].mxu0
        %v646 = vpop.f32.mrb[0].mxu0
        %647 = vdwg.mxu0
        %vm648 = vcmask 519168
        %649 = vst.msk [vmem:[%s190] sm:$0xf] %vm648, %v643
        %654 = vrot.lane.b32.xlu0 %v364, 124
        %v655 = vpop.permute.xlu0 %654
        %656 = vrot.lane.b32.xlu0 %v365, 124
        %v657 = vpop.permute.xlu0 %656
        %658 = vrot.lane.b32.xlu0 %v366, 124
        %v659 = vpop.permute.xlu0 %658
        %660 = vrot.lane.b32.xlu0 %v367, 124
        %v661 = vpop.permute.xlu0 %660
        %v664 = vsel %vm404, %v655, %v392
        %v667 = vsel %vm404, %v657, %v393
        %v670 = vsel %vm404, %v659, %v394
        %v673 = vsel %vm404, %v661, %v395
        %v675 = vrot.slane %v330, 2
        %v678 = vsel %vm419, %v675, %v329
        %v679 = vsel %vm423, %v664, 0
        %v681 = vsel %vm423, %v667, 0
        %v683 = vsel %vm423, %v670, 0
        %v685 = vsel %vm423, %v673, 0
        %v687 = vsel %vm432, %v678, 0
        %689 = vmatprep.subr.bf16.mxu0 0
        %690 = vmatpush1.bf16.msra.mxu0 %v687
        %691 = vmatprep.subr.bf16.mxu0 0
        %692 = vmatpush1.bf16.msra.mxu0 0
        %693 = vmatprep.subr.bf16.mxu0 0
        %694 = vmatpush1.bf16.msra.mxu0 0
        %695 = vmatprep.subr.bf16.mxu0 0
        %696 = vmatpush1.bf16.msra.mxu0 0
        %697 = vmatprep.subr.bf16.mxu0 0
        %698 = vmatpush1.bf16.msra.mxu0 0
        %699 = vmatprep.subr.bf16.mxu0 0
        %700 = vmatpush1.bf16.msra.mxu0 0
        %701 = vmatprep.subr.bf16.mxu0 0
        %702 = vmatpush1.bf16.msra.mxu0 0
        %703 = vmatprep.subr.bf16.mxu0 0
        %704 = vmatpush1.bf16.msra.mxu0 0
        %705 = vmatprep.subr.bf16.mxu0 0
        %706 = vmatpush1.bf16.msra.mxu0 0
        %707 = vmatprep.subr.bf16.mxu0 0
        %708 = vmatpush1.bf16.msra.mxu0 0
        %709 = vmatprep.subr.bf16.mxu0 0
        %710 = vmatpush1.bf16.msra.mxu0 0
        %711 = vmatprep.subr.bf16.mxu0 0
        %712 = vmatpush1.bf16.msra.mxu0 0
        %713 = vmatprep.subr.bf16.mxu0 0
        %714 = vmatpush1.bf16.msra.mxu0 0
        %715 = vmatprep.subr.bf16.mxu0 0
        %716 = vmatpush1.bf16.msra.mxu0 0
        %717 = vmatprep.subr.bf16.mxu0 0
        %718 = vmatpush1.bf16.msra.mxu0 0
        %719 = vmatprep.subr.bf16.mxu0 0
        %720 = vmatpush1.bf16.msra.mxu0 0
        %721 = vmatprep.mubr.bf16.mxu0 0
        %722 = vmatmul.mubr.bf16.gmra.mrb[0].mxu0 %v679
        %v723 = vpop.f32.mrb[0].mxu0
        %v724 = vadd.f32 0.0, %v723
        %v725 = vpop.f32.mrb[0].mxu0
        %v726 = vpop.f32.mrb[0].mxu0
        %v727 = vadd.f32 0.0, %v726
        %v728 = vpop.f32.mrb[0].mxu0
        %729 = vmatprep.mubr.bf16.mxu0 0
        %730 = vmatmul.mubr.bf16.gmra.mrb[0].mxu0 %v681
        %v731 = vpop.f32.mrb[0].mxu0
        %v732 = vadd.f32 0.0, %v731
        %v733 = vpop.f32.mrb[0].mxu0
        %v734 = vpop.f32.mrb[0].mxu0
        %v735 = vadd.f32 0.0, %v734
        %v736 = vpop.f32.mrb[0].mxu0
        %737 = vmatprep.mubr.bf16.mxu0 0
        %738 = vmatmul.mubr.bf16.gmra.mrb[0].mxu0 %v683
        %v739 = vpop.f32.mrb[0].mxu0
        %v740 = vadd.f32 0.0, %v739
        %v741 = vpop.f32.mrb[0].mxu0
        %v742 = vpop.f32.mrb[0].mxu0
        %v743 = vadd.f32 0.0, %v742
        %v744 = vpop.f32.mrb[0].mxu0
        %745 = vmatprep.mubr.bf16.mxu0 0
        %746 = vmatmul.mubr.bf16.gmra.mrb[0].mxu0 %v685
        %v747 = vpop.f32.mrb[0].mxu0
        %v748 = vadd.f32 0.0, %v747
        %v749 = vpop.f32.mrb[0].mxu0
        %v750 = vpop.f32.mrb[0].mxu0
        %v751 = vadd.f32 0.0, %v750
        %v752 = vpop.f32.mrb[0].mxu0
        %753 = vdwg.mxu0
        %v754 = vsel %vm500, %v724, -inf
        %755 = vmax.xlane.f32.xlu0 %v754
        %v756 = vpop.xlane.xlu0 %755
        %v757 = vsel %vm500, %v727, -inf
        %758 = vmax.xlane.f32.xlu0 %v757
        %v759 = vpop.xlane.xlu0 %758
        %v760 = vsel %vm500, %v732, -inf
        %761 = vmax.xlane.f32.xlu0 %v760
        %v762 = vpop.xlane.xlu0 %761
        %v763 = vsel %vm500, %v735, -inf
        %764 = vmax.xlane.f32.xlu0 %v763
        %v765 = vpop.xlane.xlu0 %764
        %v766 = vsel %vm500, %v740, -inf
        %767 = vmax.xlane.f32.xlu0 %v766
        %v768 = vpop.xlane.xlu0 %767
        %v769 = vsel %vm500, %v743, -inf
        %770 = vmax.xlane.f32.xlu0 %v769
        %v771 = vpop.xlane.xlu0 %770
        %v772 = vsel %vm500, %v748, -inf
        %773 = vmax.xlane.f32.xlu0 %v772
        %v774 = vpop.xlane.xlu0 %773
        %v775 = vsel %vm500, %v751, -inf
        %776 = vmax.xlane.f32.xlu0 %v775
        %v777 = vpop.xlane.xlu0 %776
        %v778 = vsub.f32 %v724, %v756
        %v779 = vsub.f32 %v727, %v759
        %v780 = vsub.f32 %v732, %v762
        %v781 = vsub.f32 %v735, %v765
        %v782 = vsub.f32 %v740, %v768
        %v783 = vsub.f32 %v743, %v771
        %v784 = vsub.f32 %v748, %v774
        %v785 = vsub.f32 %v751, %v777
        %v786 = vmul.f32 %v778, 1.442695
        %v787 = vpow.pop %v786
        %v788 = vmul.f32 %v779, 1.442695
        %v789 = vpow.pop %v788
        %v790 = vmul.f32 %v780, 1.442695
        %v791 = vpow.pop %v790
        %v792 = vmul.f32 %v781, 1.442695
        %v793 = vpow.pop %v792
        %v794 = vmul.f32 %v782, 1.442695
        %v795 = vpow.pop %v794
        %v796 = vmul.f32 %v783, 1.442695
        %v797 = vpow.pop %v796
        %v798 = vmul.f32 %v784, 1.442695
        %v799 = vpow.pop %v798
        %v800 = vmul.f32 %v785, 1.442695
        %v801 = vpow.pop %v800
        %v802 = vsel %vm500, %v787, 0.0
        %803 = vadd.xlane.f32.xlu0 %v802
        %v804 = vpop.xlane.xlu0 %803
        %v805 = vsel %vm500, %v789, 0.0
        %806 = vadd.xlane.f32.xlu0 %v805
        %v807 = vpop.xlane.xlu0 %806
        %v808 = vsel %vm500, %v791, 0.0
        %809 = vadd.xlane.f32.xlu0 %v808
        %v810 = vpop.xlane.xlu0 %809
        %v811 = vsel %vm500, %v793, 0.0
        %812 = vadd.xlane.f32.xlu0 %v811
        %v813 = vpop.xlane.xlu0 %812
        %v814 = vsel %vm500, %v795, 0.0
        %815 = vadd.xlane.f32.xlu0 %v814
        %v816 = vpop.xlane.xlu0 %815
        %v817 = vsel %vm500, %v797, 0.0
        %818 = vadd.xlane.f32.xlu0 %v817
        %v819 = vpop.xlane.xlu0 %818
        %v820 = vsel %vm500, %v799, 0.0
        %821 = vadd.xlane.f32.xlu0 %v820
        %v822 = vpop.xlane.xlu0 %821
        %v823 = vsel %vm500, %v801, 0.0
        %824 = vadd.xlane.f32.xlu0 %v823
        %v825 = vpop.xlane.xlu0 %824
        %v826 = vrcp.pop %v804
        %v827 = vrcp.pop %v807
        %v828 = vrcp.pop %v810
        %v829 = vrcp.pop %v813
        %v830 = vrcp.pop %v816
        %v831 = vrcp.pop %v819
        %v832 = vrcp.pop %v822
        %v833 = vrcp.pop %v825
        %v834 = vmul.f32 %v787, %v826
        %v835 = vmul.f32 %v789, %v827
        %v836 = vmul.f32 %v791, %v828
        %v837 = vmul.f32 %v793, %v829
        %v838 = vmul.f32 %v795, %v830
        %v839 = vmul.f32 %v797, %v831
        %v840 = vmul.f32 %v799, %v832
        %v841 = vmul.f32 %v801, %v833
        %v842 = vpack.c.bf16 %v835, %v834
        %v843 = vpack.c.bf16 %v837, %v836
        %v844 = vpack.c.bf16 %v839, %v838
        %v845 = vpack.c.bf16 %v841, %v840
        %v847 = vrot.slane %v331, 2
        %v849 = vsel %vm500, %v847, 0
        %v852 = vsel %vm500, %v842, 0
        %v855 = vsel %vm500, %v843, 0
        %v858 = vsel %vm500, %v844, 0
        %v861 = vsel %vm500, %v845, 0
        %863 = vmatprep.subr.bf16.mxu0 0
        %864 = vmatpush1.bf16.xpose.msra.mxu0 %v852
        %865 = vmatprep.subr.bf16.mxu0 0
        %866 = vmatpush1.bf16.xpose.msra.mxu0 %v855
        %867 = vmatprep.subr.bf16.mxu0 0
        %868 = vmatpush1.bf16.xpose.msra.mxu0 %v858
        %869 = vmatprep.subr.bf16.mxu0 0
        %870 = vmatpush1.bf16.xpose.msra.mxu0 %v861
        %871 = vmatprep.subr.bf16.mxu0 0
        %872 = vmatpush1.bf16.xpose.msra.mxu0 0
        %873 = vmatprep.subr.bf16.mxu0 0
        %874 = vmatpush1.bf16.xpose.msra.mxu0 0
        %875 = vmatprep.subr.bf16.mxu0 0
        %876 = vmatpush1.bf16.xpose.msra.mxu0 0
        %877 = vmatprep.subr.bf16.mxu0 0
        %878 = vmatpush1.bf16.xpose.msra.mxu0 0
        %879 = vmatprep.subr.bf16.mxu0 0
        %880 = vmatpush1.bf16.xpose.msra.mxu0 0
        %881 = vmatprep.subr.bf16.mxu0 0
        %882 = vmatpush1.bf16.xpose.msra.mxu0 0
        %883 = vmatprep.subr.bf16.mxu0 0
        %884 = vmatpush1.bf16.xpose.msra.mxu0 0
        %885 = vmatprep.subr.bf16.mxu0 0
        %886 = vmatpush1.bf16.xpose.msra.mxu0 0
        %887 = vmatprep.subr.bf16.mxu0 0
        %888 = vmatpush1.bf16.xpose.msra.mxu0 0
        %889 = vmatprep.subr.bf16.mxu0 0
        %890 = vmatpush1.bf16.xpose.msra.mxu0 0
        %891 = vmatprep.subr.bf16.mxu0 0
        %892 = vmatpush1.bf16.xpose.msra.mxu0 0
        %893 = vmatprep.subr.bf16.mxu0 0
        %894 = vmatpush1.bf16.xpose.msra.mxu0 0
        %895 = vmatprep.mubr.bf16.mxu0 0
        %896 = vmatmul.mubr.bf16.gmra.mrb[0].mxu0 %v849
        %v897 = vpop.f32.mrb[0].mxu0
        %v898 = vadd.f32 0.0, %v897
        %v899 = vpop.f32.mrb[0].mxu0
        %v900 = vpop.f32.mrb[0].mxu0
        %v901 = vpop.f32.mrb[0].mxu0
        %902 = vdwg.mxu0
        %903 = vst.msk [vmem:[%s190 + $0x4] sm:$0xf] %vm648, %v898
        %904 = vrot.lane.b32.xlu0 %v364, 120
        %v905 = vpop.permute.xlu0 %904
        %906 = vrot.lane.b32.xlu0 %v365, 120
        %v907 = vpop.permute.xlu0 %906
        %908 = vrot.lane.b32.xlu0 %v366, 120
        %v909 = vpop.permute.xlu0 %908
        %910 = vrot.lane.b32.xlu0 %v367, 120
        %v911 = vpop.permute.xlu0 %910
        %912 = vrot.lane.b32.xlu0 %v392, 124
        %v913 = vpop.permute.xlu0 %912
        %914 = vrot.lane.b32.xlu0 %v393, 124
        %v915 = vpop.permute.xlu0 %914
        %916 = vrot.lane.b32.xlu0 %v394, 124
        %v917 = vpop.permute.xlu0 %916
        %918 = vrot.lane.b32.xlu0 %v395, 124
        %v919 = vpop.permute.xlu0 %918
        %v922 = vsel %vm404, %v905, %v913
        %v925 = vsel %vm404, %v907, %v915
        %v928 = vsel %vm404, %v909, %v917
        %v931 = vsel %vm404, %v911, %v919
        %v932 = vrot.slane %v330, 4
        %v933 = vrot.slane %v329, 2
        %v936 = vsel %vm419, %v932, %v933
        %v937 = vsel %vm423, %v922, 0
        %v939 = vsel %vm423, %v925, 0
        %v941 = vsel %vm423, %v928, 0
        %v943 = vsel %vm423, %v931, 0
        %v945 = vsel %vm432, %v936, 0
        %947 = vmatprep.subr.bf16.mxu0 0
        %948 = vmatpush1.bf16.msra.mxu0 %v945
        %949 = vmatprep.subr.bf16.mxu0 0
        %950 = vmatpush1.bf16.msra.mxu0 0
        %951 = vmatprep.subr.bf16.mxu0 0
        %952 = vmatpush1.bf16.msra.mxu0 0
        %953 = vmatprep.subr.bf16.mxu0 0
        %954 = vmatpush1.bf16.msra.mxu0 0
        %955 = vmatprep.subr.bf16.mxu0 0
        %956 = vmatpush1.bf16.msra.mxu0 0
        %957 = vmatprep.subr.bf16.mxu0 0
        %958 = vmatpush1.bf16.msra.mxu0 0
        %959 = vmatprep.subr.bf16.mxu0 0
        %960 = vmatpush1.bf16.msra.mxu0 0
        %961 = vmatprep.subr.bf16.mxu0 0
        %962 = vmatpush1.bf16.msra.mxu0 0
        %963 = vmatprep.subr.bf16.mxu0 0
        %964 = vmatpush1.bf16.msra.mxu0 0
        %965 = vmatprep.subr.bf16.mxu0 0
        %966 = vmatpush1.bf16.msra.mxu0 0
        %967 = vmatprep.subr.bf16.mxu0 0
        %968 = vmatpush1.bf16.msra.mxu0 0
        %969 = vmatprep.subr.bf16.mxu0 0
        %970 = vmatpush1.bf16.msra.mxu0 0
        %971 = vmatprep.subr.bf16.mxu0 0
        %972 = vmatpush1.bf16.msra.mxu0 0
        %973 = vmatprep.subr.bf16.mxu0 0
        %974 = vmatpush1.bf16.msra.mxu0 0
        %975 = vmatprep.subr.bf16.mxu0 0
        %976 = vmatpush1.bf16.msra.mxu0 0
        %977 = vmatprep.subr.bf16.mxu0 0
        %978 = vmatpush1.bf16.msra.mxu0 0
        %979 = vmatprep.mubr.bf16.mxu0 0
        %980 = vmatmul.mubr.bf16.gmra.mrb[0].mxu0 %v937
        %v981 = vpop.f32.mrb[0].mxu0
        %v982 = vadd.f32 0.0, %v981
        %v983 = vpop.f32.mrb[0].mxu0
        %v984 = vpop.f32.mrb[0].mxu0
        %v985 = vadd.f32 0.0, %v984
        %v986 = vpop.f32.mrb[0].mxu0
        %987 = vmatprep.mubr.bf16.mxu0 0
        %988 = vmatmul.mubr.bf16.gmra.mrb[0].mxu0 %v939
        %v989 = vpop.f32.mrb[0].mxu0
        %v990 = vadd.f32 0.0, %v989
        %v991 = vpop.f32.mrb[0].mxu0
        %v992 = vpop.f32.mrb[0].mxu0
        %v993 = vadd.f32 0.0, %v992
        %v994 = vpop.f32.mrb[0].mxu0
        %995 = vmatprep.mubr.bf16.mxu0 0
        %996 = vmatmul.mubr.bf16.gmra.mrb[0].mxu0 %v941
        %v997 = vpop.f32.mrb[0].mxu0
        %v998 = vadd.f32 0.0, %v997
        %v999 = vpop.f32.mrb[0].mxu0
        %v1000 = vpop.f32.mrb[0].mxu0
        %v1001 = vadd.f32 0.0, %v1000
        %v1002 = vpop.f32.mrb[0].mxu0
        %1003 = vmatprep.mubr.bf16.mxu0 0
        %1004 = vmatmul.mubr.bf16.gmra.mrb[0].mxu0 %v943
        %v1005 = vpop.f32.mrb[0].mxu0
        %v1006 = vadd.f32 0.0, %v1005
        %v1007 = vpop.f32.mrb[0].mxu0
        %v1008 = vpop.f32.mrb[0].mxu0
        %v1009 = vadd.f32 0.0, %v1008
        %v1010 = vpop.f32.mrb[0].mxu0
        %1011 = vdwg.mxu0
        %v1012 = vsel %vm500, %v982, -inf
        %1013 = vmax.xlane.f32.xlu0 %v1012
        %v1014 = vpop.xlane.xlu0 %1013
        %v1015 = vsel %vm500, %v985, -inf
        %1016 = vmax.xlane.f32.xlu0 %v1015
        %v1017 = vpop.xlane.xlu0 %1016
        %v1018 = vsel %vm500, %v990, -inf
        %1019 = vmax.xlane.f32.xlu0 %v1018
        %v1020 = vpop.xlane.xlu0 %1019
        %v1021 = vsel %vm500, %v993, -inf
        %1022 = vmax.xlane.f32.xlu0 %v1021
        %v1023 = vpop.xlane.xlu0 %1022
        %v1024 = vsel %vm500, %v998, -inf
        %1025 = vmax.xlane.f32.xlu0 %v1024
        %v1026 = vpop.xlane.xlu0 %1025
        %v1027 = vsel %vm500, %v1001, -inf
        %1028 = vmax.xlane.f32.xlu0 %v1027
        %v1029 = vpop.xlane.xlu0 %1028
        %v1030 = vsel %vm500, %v1006, -inf
        %1031 = vmax.xlane.f32.xlu0 %v1030
        %v1032 = vpop.xlane.xlu0 %1031
        %v1033 = vsel %vm500, %v1009, -inf
        %1034 = vmax.xlane.f32.xlu0 %v1033
        %v1035 = vpop.xlane.xlu0 %1034
        %v1036 = vsub.f32 %v982, %v1014
        %v1037 = vsub.f32 %v985, %v1017
        %v1038 = vsub.f32 %v990, %v1020
        %v1039 = vsub.f32 %v993, %v1023
        %v1040 = vsub.f32 %v998, %v1026
        %v1041 = vsub.f32 %v1001, %v1029
        %v1042 = vsub.f32 %v1006, %v1032
        %v1043 = vsub.f32 %v1009, %v1035
        %v1044 = vmul.f32 %v1036, 1.442695
        %v1045 = vpow.pop %v1044
        %v1046 = vmul.f32 %v1037, 1.442695
        %v1047 = vpow.pop %v1046
        %v1048 = vmul.f32 %v1038, 1.442695
        %v1049 = vpow.pop %v1048
        %v1050 = vmul.f32 %v1039, 1.442695
        %v1051 = vpow.pop %v1050
        %v1052 = vmul.f32 %v1040, 1.442695
        %v1053 = vpow.pop %v1052
        %v1054 = vmul.f32 %v1041, 1.442695
        %v1055 = vpow.pop %v1054
        %v1056 = vmul.f32 %v1042, 1.442695
        %v1057 = vpow.pop %v1056
        %v1058 = vmul.f32 %v1043, 1.442695
        %v1059 = vpow.pop %v1058
        %v1060 = vsel %vm500, %v1045, 0.0
        %1061 = vadd.xlane.f32.xlu0 %v1060
        %v1062 = vpop.xlane.xlu0 %1061
        %v1063 = vsel %vm500, %v1047, 0.0
        %1064 = vadd.xlane.f32.xlu0 %v1063
        %v1065 = vpop.xlane.xlu0 %1064
        %v1066 = vsel %vm500, %v1049, 0.0
        %1067 = vadd.xlane.f32.xlu0 %v1066
        %v1068 = vpop.xlane.xlu0 %1067
        %v1069 = vsel %vm500, %v1051, 0.0
        %1070 = vadd.xlane.f32.xlu0 %v1069
        %v1071 = vpop.xlane.xlu0 %1070
        %v1072 = vsel %vm500, %v1053, 0.0
        %1073 = vadd.xlane.f32.xlu0 %v1072
        %v1074 = vpop.xlane.xlu0 %1073
        %v1075 = vsel %vm500, %v1055, 0.0
        %1076 = vadd.xlane.f32.xlu0 %v1075
        %v1077 = vpop.xlane.xlu0 %1076
        %v1078 = vsel %vm500, %v1057, 0.0
        %1079 = vadd.xlane.f32.xlu0 %v1078
        %v1080 = vpop.xlane.xlu0 %1079
        %v1081 = vsel %vm500, %v1059, 0.0
        %1082 = vadd.xlane.f32.xlu0 %v1081
        %v1083 = vpop.xlane.xlu0 %1082
        %v1084 = vrcp.pop %v1062
        %v1085 = vrcp.pop %v1065
        %v1086 = vrcp.pop %v1068
        %v1087 = vrcp.pop %v1071
        %v1088 = vrcp.pop %v1074
        %v1089 = vrcp.pop %v1077
        %v1090 = vrcp.pop %v1080
        %v1091 = vrcp.pop %v1083
        %v1092 = vmul.f32 %v1045, %v1084
        %v1093 = vmul.f32 %v1047, %v1085
        %v1094 = vmul.f32 %v1049, %v1086
        %v1095 = vmul.f32 %v1051, %v1087
        %v1096 = vmul.f32 %v1053, %v1088
        %v1097 = vmul.f32 %v1055, %v1089
        %v1098 = vmul.f32 %v1057, %v1090
        %v1099 = vmul.f32 %v1059, %v1091
        %v1100 = vpack.c.bf16 %v1093, %v1092
        %v1101 = vpack.c.bf16 %v1095, %v1094
        %v1102 = vpack.c.bf16 %v1097, %v1096
        %v1103 = vpack.c.bf16 %v1099, %v1098
        %v1104 = vrot.slane %v331, 4
        %v1106 = vsel %vm500, %v1104, 0
        %v1109 = vsel %vm500, %v1100, 0
        %v1112 = vsel %vm500, %v1101, 0
        %v1115 = vsel %vm500, %v1102, 0
        %v1118 = vsel %vm500, %v1103, 0
        %1120 = vmatprep.subr.bf16.mxu0 0
        %1121 = vmatpush1.bf16.xpose.msra.mxu0 %v1109
        %1122 = vmatprep.subr.bf16.mxu0 0
        %1123 = vmatpush1.bf16.xpose.msra.mxu0 %v1112
        %1124 = vmatprep.subr.bf16.mxu0 0
        %1125 = vmatpush1.bf16.xpose.msra.mxu0 %v1115
        %1126 = vmatprep.subr.bf16.mxu0 0
        %1127 = vmatpush1.bf16.xpose.msra.mxu0 %v1118
        %1128 = vmatprep.subr.bf16.mxu0 0
        %1129 = vmatpush1.bf16.xpose.msra.mxu0 0
        %1130 = vmatprep.subr.bf16.mxu0 0
        %1131 = vmatpush1.bf16.xpose.msra.mxu0 0
        %1132 = vmatprep.subr.bf16.mxu0 0
        %1133 = vmatpush1.bf16.xpose.msra.mxu0 0
        %1134 = vmatprep.subr.bf16.mxu0 0
        %1135 = vmatpush1.bf16.xpose.msra.mxu0 0
        %1136 = vmatprep.subr.bf16.mxu0 0
        %1137 = vmatpush1.bf16.xpose.msra.mxu0 0
        %1138 = vmatprep.subr.bf16.mxu0 0
        %1139 = vmatpush1.bf16.xpose.msra.mxu0 0
        %1140 = vmatprep.subr.bf16.mxu0 0
        %1141 = vmatpush1.bf16.xpose.msra.mxu0 0
        %1142 = vmatprep.subr.bf16.mxu0 0
        %1143 = vmatpush1.bf16.xpose.msra.mxu0 0
        %1144 = vmatprep.subr.bf16.mxu0 0
        %1145 = vmatpush1.bf16.xpose.msra.mxu0 0
        %1146 = vmatprep.subr.bf16.mxu0 0
        %1147 = vmatpush1.bf16.xpose.msra.mxu0 0
        %1148 = vmatprep.subr.bf16.mxu0 0
        %1149 = vmatpush1.bf16.xpose.msra.mxu0 0
        %1150 = vmatprep.subr.bf16.mxu0 0
        %1151 = vmatpush1.bf16.xpose.msra.mxu0 0
        %1152 = vmatprep.mubr.bf16.mxu0 0
        %1153 = vmatmul.mubr.bf16.gmra.mrb[0].mxu0 %v1106
        %v1154 = vpop.f32.mrb[0].mxu0
        %v1155 = vadd.f32 0.0, %v1154
        %v1156 = vpop.f32.mrb[0].mxu0
        %v1157 = vpop.f32.mrb[0].mxu0
        %v1158 = vpop.f32.mrb[0].mxu0
        %1159 = vdwg.mxu0
        %1160 = vst.msk [vmem:[%s190 + $0x8] sm:$0xf] %vm648, %v1155
        %1161 = vrot.lane.b32.xlu0 %v364, 116
        %v1162 = vpop.permute.xlu0 %1161
        %1163 = vrot.lane.b32.xlu0 %v365, 116
        %v1164 = vpop.permute.xlu0 %1163
        %1165 = vrot.lane.b32.xlu0 %v366, 116
        %v1166 = vpop.permute.xlu0 %1165
        %1167 = vrot.lane.b32.xlu0 %v367, 116
        %v1168 = vpop.permute.xlu0 %1167
        %1169 = vrot.lane.b32.xlu0 %v392, 120
        %v1170 = vpop.permute.xlu0 %1169
        %1171 = vrot.lane.b32.xlu0 %v393, 120
        %v1172 = vpop.permute.xlu0 %1171
        %1173 = vrot.lane.b32.xlu0 %v394, 120
        %v1174 = vpop.permute.xlu0 %1173
        %1175 = vrot.lane.b32.xlu0 %v395, 120
        %v1176 = vpop.permute.xlu0 %1175
        %v1179 = vsel %vm404, %v1162, %v1170
        %v1182 = vsel %vm404, %v1164, %v1172
        %v1185 = vsel %vm404, %v1166, %v1174
        %v1188 = vsel %vm404, %v1168, %v1176
        %v1189 = vrot.slane %v330, 6
        %v1190 = vrot.slane %v329, 4
        %v1193 = vsel %vm419, %v1189, %v1190
        %v1194 = vsel %vm423, %v1179, 0
        %v1196 = vsel %vm423, %v1182, 0
        %v1198 = vsel %vm423, %v1185, 0
        %v1200 = vsel %vm423, %v1188, 0
        %v1202 = vsel %vm432, %v1193, 0
        %1204 = vmatprep.subr.bf16.mxu0 0
        %1205 = vmatpush1.bf16.msra.mxu0 %v1202
        %1206 = vmatprep.subr.bf16.mxu0 0
        %1207 = vmatpush1.bf16.msra.mxu0 0
        %1208 = vmatprep.subr.bf16.mxu0 0
        %1209 = vmatpush1.bf16.msra.mxu0 0
        %1210 = vmatprep.subr.bf16.mxu0 0
        %1211 = vmatpush1.bf16.msra.mxu0 0
        %1212 = vmatprep.subr.bf16.mxu0 0
        %1213 = vmatpush1.bf16.msra.mxu0 0
        %1214 = vmatprep.subr.bf16.mxu0 0
        %1215 = vmatpush1.bf16.msra.mxu0 0
        %1216 = vmatprep.subr.bf16.mxu0 0
        %1217 = vmatpush1.bf16.msra.mxu0 0
        %1218 = vmatprep.subr.bf16.mxu0 0
        %1219 = vmatpush1.bf16.msra.mxu0 0
        %1220 = vmatprep.subr.bf16.mxu0 0
        %1221 = vmatpush1.bf16.msra.mxu0 0
        %1222 = vmatprep.subr.bf16.mxu0 0
        %1223 = vmatpush1.bf16.msra.mxu0 0
        %1224 = vmatprep.subr.bf16.mxu0 0
        %1225 = vmatpush1.bf16.msra.mxu0 0
        %1226 = vmatprep.subr.bf16.mxu0 0
        %1227 = vmatpush1.bf16.msra.mxu0 0
        %1228 = vmatprep.subr.bf16.mxu0 0
        %1229 = vmatpush1.bf16.msra.mxu0 0
        %1230 = vmatprep.subr.bf16.mxu0 0
        %1231 = vmatpush1.bf16.msra.mxu0 0
        %1232 = vmatprep.subr.bf16.mxu0 0
        %1233 = vmatpush1.bf16.msra.mxu0 0
        %1234 = vmatprep.subr.bf16.mxu0 0
        %1235 = vmatpush1.bf16.msra.mxu0 0
        %1236 = vmatprep.mubr.bf16.mxu0 0
        %1237 = vmatmul.mubr.bf16.gmra.mrb[0].mxu0 %v1194
        %v1238 = vpop.f32.mrb[0].mxu0
        %v1239 = vadd.f32 0.0, %v1238
        %v1240 = vpop.f32.mrb[0].mxu0
        %v1241 = vpop.f32.mrb[0].mxu0
        %v1242 = vadd.f32 0.0, %v1241
        %v1243 = vpop.f32.mrb[0].mxu0
        %1244 = vmatprep.mubr.bf16.mxu0 0
        %1245 = vmatmul.mubr.bf16.gmra.mrb[0].mxu0 %v1196
        %v1246 = vpop.f32.mrb[0].mxu0
        %v1247 = vadd.f32 0.0, %v1246
        %v1248 = vpop.f32.mrb[0].mxu0
        %v1249 = vpop.f32.mrb[0].mxu0
        %v1250 = vadd.f32 0.0, %v1249
        %v1251 = vpop.f32.mrb[0].mxu0
        %1252 = vmatprep.mubr.bf16.mxu0 0
        %1253 = vmatmul.mubr.bf16.gmra.mrb[0].mxu0 %v1198
        %v1254 = vpop.f32.mrb[0].mxu0
        %v1255 = vadd.f32 0.0, %v1254
        %v1256 = vpop.f32.mrb[0].mxu0
        %v1257 = vpop.f32.mrb[0].mxu0
        %v1258 = vadd.f32 0.0, %v1257
        %v1259 = vpop.f32.mrb[0].mxu0
        %1260 = vmatprep.mubr.bf16.mxu0 0
        %1261 = vmatmul.mubr.bf16.gmra.mrb[0].mxu0 %v1200
        %v1262 = vpop.f32.mrb[0].mxu0
        %v1263 = vadd.f32 0.0, %v1262
        %v1264 = vpop.f32.mrb[0].mxu0
        %v1265 = vpop.f32.mrb[0].mxu0
        %v1266 = vadd.f32 0.0, %v1265
        %v1267 = vpop.f32.mrb[0].mxu0
        %1268 = vdwg.mxu0
        %v1269 = vsel %vm500, %v1239, -inf
        %1270 = vmax.xlane.f32.xlu0 %v1269
        %v1271 = vpop.xlane.xlu0 %1270
        %v1272 = vsel %vm500, %v1242, -inf
        %1273 = vmax.xlane.f32.xlu0 %v1272
        %v1274 = vpop.xlane.xlu0 %1273
        %v1275 = vsel %vm500, %v1247, -inf
        %1276 = vmax.xlane.f32.xlu0 %v1275
        %v1277 = vpop.xlane.xlu0 %1276
        %v1278 = vsel %vm500, %v1250, -inf
        %1279 = vmax.xlane.f32.xlu0 %v1278
        %v1280 = vpop.xlane.xlu0 %1279
        %v1281 = vsel %vm500, %v1255, -inf
        %1282 = vmax.xlane.f32.xlu0 %v1281
        %v1283 = vpop.xlane.xlu0 %1282
        %v1284 = vsel %vm500, %v1258, -inf
        %1285 = vmax.xlane.f32.xlu0 %v1284
        %v1286 = vpop.xlane.xlu0 %1285
        %v1287 = vsel %vm500, %v1263, -inf
        %1288 = vmax.xlane.f32.xlu0 %v1287
        %v1289 = vpop.xlane.xlu0 %1288
        %v1290 = vsel %vm500, %v1266, -inf
        %1291 = vmax.xlane.f32.xlu0 %v1290
        %v1292 = vpop.xlane.xlu0 %1291
        %v1293 = vsub.f32 %v1239, %v1271
        %v1294 = vsub.f32 %v1242, %v1274
        %v1295 = vsub.f32 %v1247, %v1277
        %v1296 = vsub.f32 %v1250, %v1280
        %v1297 = vsub.f32 %v1255, %v1283
        %v1298 = vsub.f32 %v1258, %v1286
        %v1299 = vsub.f32 %v1263, %v1289
        %v1300 = vsub.f32 %v1266, %v1292
        %v1301 = vmul.f32 %v1293, 1.442695
        %v1302 = vpow.pop %v1301
        %v1303 = vmul.f32 %v1294, 1.442695
        %v1304 = vpow.pop %v1303
        %v1305 = vmul.f32 %v1295, 1.442695
        %v1306 = vpow.pop %v1305
        %v1307 = vmul.f32 %v1296, 1.442695
        %v1308 = vpow.pop %v1307
        %v1309 = vmul.f32 %v1297, 1.442695
        %v1310 = vpow.pop %v1309
        %v1311 = vmul.f32 %v1298, 1.442695
        %v1312 = vpow.pop %v1311
        %v1313 = vmul.f32 %v1299, 1.442695
        %v1314 = vpow.pop %v1313
        %v1315 = vmul.f32 %v1300, 1.442695
        %v1316 = vpow.pop %v1315
        %v1317 = vsel %vm500, %v1302, 0.0
        %1318 = vadd.xlane.f32.xlu0 %v1317
        %v1319 = vpop.xlane.xlu0 %1318
        %v1320 = vsel %vm500, %v1304, 0.0
        %1321 = vadd.xlane.f32.xlu0 %v1320
        %v1322 = vpop.xlane.xlu0 %1321
        %v1323 = vsel %vm500, %v1306, 0.0
        %1324 = vadd.xlane.f32.xlu0 %v1323
        %v1325 = vpop.xlane.xlu0 %1324
        %v1326 = vsel %vm500, %v1308, 0.0
        %1327 = vadd.xlane.f32.xlu0 %v1326
        %v1328 = vpop.xlane.xlu0 %1327
        %v1329 = vsel %vm500, %v1310, 0.0
        %1330 = vadd.xlane.f32.xlu0 %v1329
        %v1331 = vpop.xlane.xlu0 %1330
        %v1332 = vsel %vm500, %v1312, 0.0
        %1333 = vadd.xlane.f32.xlu0 %v1332
        %v1334 = vpop.xlane.xlu0 %1333
        %v1335 = vsel %vm500, %v1314, 0.0
        %1336 = vadd.xlane.f32.xlu0 %v1335
        %v1337 = vpop.xlane.xlu0 %1336
        %v1338 = vsel %vm500, %v1316, 0.0
        %1339 = vadd.xlane.f32.xlu0 %v1338
        %v1340 = vpop.xlane.xlu0 %1339
        %v1341 = vrcp.pop %v1319
        %v1342 = vrcp.pop %v1322
        %v1343 = vrcp.pop %v1325
        %v1344 = vrcp.pop %v1328
        %v1345 = vrcp.pop %v1331
        %v1346 = vrcp.pop %v1334
        %v1347 = vrcp.pop %v1337
        %v1348 = vrcp.pop %v1340
        %v1349 = vmul.f32 %v1302, %v1341
        %v1350 = vmul.f32 %v1304, %v1342
        %v1351 = vmul.f32 %v1306, %v1343
        %v1352 = vmul.f32 %v1308, %v1344
        %v1353 = vmul.f32 %v1310, %v1345
        %v1354 = vmul.f32 %v1312, %v1346
        %v1355 = vmul.f32 %v1314, %v1347
        %v1356 = vmul.f32 %v1316, %v1348
        %v1357 = vpack.c.bf16 %v1350, %v1349
        %v1358 = vpack.c.bf16 %v1352, %v1351
        %v1359 = vpack.c.bf16 %v1354, %v1353
        %v1360 = vpack.c.bf16 %v1356, %v1355
        %v1361 = vrot.slane %v331, 6
        %v1363 = vsel %vm500, %v1361, 0
        %v1366 = vsel %vm500, %v1357, 0
        %v1369 = vsel %vm500, %v1358, 0
        %v1372 = vsel %vm500, %v1359, 0
        %v1375 = vsel %vm500, %v1360, 0
        %1377 = vmatprep.subr.bf16.mxu0 0
        %1378 = vmatpush1.bf16.xpose.msra.mxu0 %v1366
        %1379 = vmatprep.subr.bf16.mxu0 0
        %1380 = vmatpush1.bf16.xpose.msra.mxu0 %v1369
        %1381 = vmatprep.subr.bf16.mxu0 0
        %1382 = vmatpush1.bf16.xpose.msra.mxu0 %v1372
        %1383 = vmatprep.subr.bf16.mxu0 0
        %1384 = vmatpush1.bf16.xpose.msra.mxu0 %v1375
        %1385 = vmatprep.subr.bf16.mxu0 0
        %1386 = vmatpush1.bf16.xpose.msra.mxu0 0
        %1387 = vmatprep.subr.bf16.mxu0 0
        %1388 = vmatpush1.bf16.xpose.msra.mxu0 0
        %1389 = vmatprep.subr.bf16.mxu0 0
        %1390 = vmatpush1.bf16.xpose.msra.mxu0 0
        %1391 = vmatprep.subr.bf16.mxu0 0
        %1392 = vmatpush1.bf16.xpose.msra.mxu0 0
        %1393 = vmatprep.subr.bf16.mxu0 0
        %1394 = vmatpush1.bf16.xpose.msra.mxu0 0
        %1395 = vmatprep.subr.bf16.mxu0 0
        %1396 = vmatpush1.bf16.xpose.msra.mxu0 0
        %1397 = vmatprep.subr.bf16.mxu0 0
        %1398 = vmatpush1.bf16.xpose.msra.mxu0 0
        %1399 = vmatprep.subr.bf16.mxu0 0
        %1400 = vmatpush1.bf16.xpose.msra.mxu0 0
        %1401 = vmatprep.subr.bf16.mxu0 0
        %1402 = vmatpush1.bf16.xpose.msra.mxu0 0
        %1403 = vmatprep.subr.bf16.mxu0 0
        %1404 = vmatpush1.bf16.xpose.msra.mxu0 0
        %1405 = vmatprep.subr.bf16.mxu0 0
        %1406 = vmatpush1.bf16.xpose.msra.mxu0 0
        %1407 = vmatprep.subr.bf16.mxu0 0
        %1408 = vmatpush1.bf16.xpose.msra.mxu0 0
        %1409 = vmatprep.mubr.bf16.mxu0 0
        %1410 = vmatmul.mubr.bf16.gmra.mrb[0].mxu0 %v1363
        %v1411 = vpop.f32.mrb[0].mxu0
        %v1412 = vadd.f32 0.0, %v1411
        %v1413 = vpop.f32.mrb[0].mxu0
        %v1414 = vpop.f32.mrb[0].mxu0
        %v1415 = vpop.f32.mrb[0].mxu0
        %1416 = vdwg.mxu0
        %1417 = vst.msk [vmem:[%s190 + $0xc] sm:$0xf] %vm648, %v1412
        %s1418 = sand.u32 %s115, 1
        %s1419 = scalar_lea.sflag [#allocation3], %s1418
        %s1420 = sand.u32 %s115, 1
        %s1421 = smul.addr %s1420, 16
        %s1422 = scalar_lea.vmem [#allocation2], %s1421
        // Predicated region
        $region37: #{tpu_custom_call.1} parent=35 // pred_check
          %p1423 = pneg %p125
        $region38: #{tpu_custom_call.1} parent=35 // pred_check_branch
          %1425 = sbr.rel (%p1423) target = $region40
        $region39: #{tpu_custom_call.1} parent=35 // pred_region
          %s1427 = ssub.s32 256, 256
          %1428 = vsyncadd %s1419, %s1427
          %s1429 = smul.addr %s18, 2
          %s1430 = smul.addr %s1429, 128
          %s1431 = scalar_lea.hbm %s4, %s1430
          %s1432 = sshll.u32 %s1422, 4
          %s1433 = int_to_ptr.vmem [resolvable:$true] %s1432
          %1438 = dma.vmem_to_hbm [thread:$0]  %s1433, 256, %s1431, %s1419, 128, 128, 8
        $region40: #{tpu_custom_call.1} parent=35 // pred_fallthru
          _
      $region36: #{tpu_custom_call.1} parent=5 // pred_fallthru
        _
      %p1439 = scmp.le.s32.totalorder 2, %s13
      // Predicated region
      $region41: #{tpu_custom_call.1} parent=5 // pred_check
        %p1440 = pneg %p1439
      $region42: #{tpu_custom_call.1} parent=5 // pred_check_branch
        %1442 = sbr.rel (%p1440) target = $region44
      $region43: #{tpu_custom_call.1} parent=5 // pred_region
        %s1443 = ssub.s32 %s13, 2
        // Predicated region
        $region45: #{tpu_custom_call.1} parent=43 // pred_check
          %p1444 = pneg %p131
        $region46: #{tpu_custom_call.1} parent=43 // pred_check_branch
          %1446 = sbr.rel (%p1444) target = $region48
        $region47: #{tpu_custom_call.1} parent=43 // pred_region
          %s1447 = sand.u32 %s116, 1
          %s1448 = scalar_lea.sflag [#allocation3], %s1447
          %s1449 = sand.u32 %s116, 1
          %s1450 = smul.addr %s1449, 16
          %s1451 = scalar_lea.vmem [#allocation2], %s1450
          %1452 = dma.done %s1448, 256
        $region48: #{tpu_custom_call.1} parent=43 // pred_fallthru
          _
      $region44: #{tpu_custom_call.1} parent=5 // pred_fallthru
        _
    $region6: #{tpu_custom_call.1} parent=1 // loop_footer
      %s17 = sadd.s32 1, %s13
    $region7: #{tpu_custom_call.1} parent=1 // loop_footer_branch
      %12 = sbr.rel target = $region3
    $region8: #{tpu_custom_call.1} parent=1 // loop_exit
      _
    %1453 = vsyncpa [#allocation3], 1
    %s1454 = scalar_lea.sflag [#allocation3], 1
    %1455 = vsyncpa %s1454, 1

</llo_original>
